<compile_context>
chip_gen: v5e
topology: v5e:2x2
jax: 0.10.0
libtpu: 0.0.40
codegen_flags: <defaults>
</compile_context>

<pallas_src>
import functools

import jax
import jax.numpy as jnp
from jax.experimental import pallas as pl
from jax.experimental.pallas import tpu as pltpu


def _adapter_kernel(feat_ref, w1t_ref, b1_ref, w2t_ref, b2_ref, out_ref, *, inv_hw):
    # feat_ref / out_ref block: (Bg_tile, F, HWp) -- HWp lane-dense (multiple of 128).
    # w1t_ref / w2t_ref: (F, F) pre-transposed Linear weights (in x out).
    # b1_ref / b2_ref  : (1, F) lane-major bias rows.

    # Global average pool over the spatial (lane) axis with an f32 accumulator.
    pooled = jnp.sum(feat_ref[...], axis=-1, dtype=jnp.float32) * inv_hw     # (Bg_tile, F)

    # SE MLP in row form on the MXU: (Bg_tile, F) @ (F, F), weights in native dtype.
    h = jnp.dot(pooled.astype(w1t_ref.dtype), w1t_ref[...],
                preferred_element_type=jnp.float32,
                precision=jax.lax.Precision.HIGHEST)
    h = jnp.maximum(h + b1_ref[...].astype(jnp.float32), 0.0)                # ReLU
    s = jnp.dot(h.astype(w2t_ref.dtype), w2t_ref[...],
                preferred_element_type=jnp.float32,
                precision=jax.lax.Precision.HIGHEST)
    s = jax.nn.sigmoid(s + b2_ref[...].astype(jnp.float32))                  # (Bg_tile, F)

    # Scale: one native-dtype multiply per element; per-feature score broadcast
    # across the spatial lanes.  No f32 slab temporary.
    out_ref[...] = feat_ref[...] * s[:, :, None].astype(out_ref.dtype)


def _pick_bg_tile(bg, slab_bytes, fixed_bytes, budget_bytes):
    """Largest divisor of bg whose feat block (double-buffered in + out) fits the
    VMEM budget, preferring blocks <= ~8 MiB and a grid length >= 2 (v7x megacore)."""
    divisors = [d for d in range(1, bg + 1) if bg % d == 0]

    def fits(t):
        return 4 * t * slab_bytes + fixed_bytes + (4 << 20) <= budget_bytes

    cands = [t for t in divisors if fits(t) and t * slab_bytes <= (8 << 20)]
    if not cands:
        cands = [t for t in divisors if fits(t)] or [1]
    pref = [t for t in cands if bg // t >= 2]
    return max(pref if pref else cands)


def adapter_forward(feat, w1, b1, w2, b2, *, num_views):
    """feat: (B, C, H, W); w1, w2: (F, F); b1, b2: (F,) with F = num_views * C.

    Returns (B // num_views, F, H, W), matching Adapter.forward.
    """
    B, C, H, W = feat.shape
    assert B % num_views == 0, "batch must be a multiple of num_views"
    Bg = B // num_views
    F = num_views * C
    HW = H * W
    assert w1.shape == (F, F) and w2.shape == (F, F)
    assert b1.shape == (F,) and b2.shape == (F,)

    # Flatten spatial onto the lane axis; pad to a multiple of 128 for dense stores.
    x = feat.reshape(Bg, F, HW)
    HWp = ((HW + 127) // 128) * 128
    if HWp != HW:
        x = jnp.pad(x, ((0, 0), (0, 0), (0, HWp - HW)))   # zeros don't perturb the sum

    # Row-form MLP: pre-transpose the PyTorch (out, in) weights; lane-major biases.
    w1t = w1.T
    w2t = w2.T
    b1r = b1.reshape(1, F)
    b2r = b2.reshape(1, F)

    itemsize = jnp.dtype(feat.dtype).itemsize
    w_itemsize = jnp.dtype(w1.dtype).itemsize
    slab_bytes = F * HWp * itemsize                       # one grouped-batch element
    # Weights/biases are single-buffered (pl.Buffered(1), constant index maps).
    fixed_bytes = 2 * F * F * w_itemsize + 2 * 8 * F * w_itemsize

    # Generation-aware VMEM budget (v7x: 64 MiB / TC, v5e/v6e: 128 MiB).
    try:
        vmem_cap = int(pltpu.get_tpu_info().vmem_capacity_bytes)
    except Exception:
        vmem_cap = 64 * 1024 * 1024                       # conservative fallback
    budget = int(vmem_cap * 0.85)

    bg_tile = _pick_bg_tile(Bg, slab_bytes, fixed_bytes, budget)
    # TODO(synk): if even bg_tile == 1 overflows the VMEM budget (huge F*HW on v7x),
    # fall back to a two-pass structure: a small pool+MLP kernel producing (Bg, F)
    # scores, then a freely tiled scale kernel over Bg/F/HW.
    block_bytes = bg_tile * slab_bytes
    vmem_bytes = int(min(4 * block_bytes + fixed_bytes + (8 << 20), budget))
    vmem_bytes = max(vmem_bytes, 1 << 20)

    cost = pl.CostEstimate(
        flops=Bg * (2 * F * HW + 4 * F * F),              # pool + scale + two FxF matmuls
        transcendentals=Bg * F,                            # sigmoid
        bytes_accessed=2 * Bg * F * HWp * itemsize         # read + write feat
        + 2 * F * F * w_itemsize
        + 2 * F * jnp.dtype(b1.dtype).itemsize,
    )

    out = pl.pallas_call(
        functools.partial(_adapter_kernel, inv_hw=1.0 / HW),
        out_shape=jax.ShapeDtypeStruct((Bg, F, HWp), feat.dtype),
        grid=(Bg // bg_tile,),
        in_specs=[
            pl.BlockSpec((bg_tile, F, HWp), lambda b: (b, 0, 0)),      # feat slab
            pl.BlockSpec((F, F), lambda b: (0, 0),                     # W1^T (resident)
                         pipeline_mode=pl.Buffered(1)),
            pl.BlockSpec((1, F), lambda b: (0, 0),                     # b1 row
                         pipeline_mode=pl.Buffered(1)),
            pl.BlockSpec((F, F), lambda b: (0, 0),                     # W2^T (resident)
                         pipeline_mode=pl.Buffered(1)),
            pl.BlockSpec((1, F), lambda b: (0, 0),                     # b2 row
                         pipeline_mode=pl.Buffered(1)),
        ],
        out_specs=pl.BlockSpec((bg_tile, F, HWp), lambda b: (b, 0, 0)),
        compiler_params=pltpu.CompilerParams(
            dimension_semantics=("parallel",),            # independent per group block
            vmem_limit_bytes=vmem_bytes,
        ),
        cost_estimate=cost,
    )(x, w1t, b1r, w2t, b2r)

    if HWp != HW:
        out = out[:, :, :HW]
    return out.reshape(Bg, F, H, W)


def _reference(feat, w1, b1, w2, b2, num_views):
    B, C, H, W = feat.shape
    f = feat.reshape(B // num_views, num_views * C, H, W)
    score = jnp.mean(f.astype(jnp.float32), axis=(2, 3))                       # (Bg, F)
    score = jnp.maximum(
        jnp.dot(score, w1.T, precision=jax.lax.Precision.HIGHEST) + b1, 0.0)
    score = jax.nn.sigmoid(
        jnp.dot(score, w2.T, precision=jax.lax.Precision.HIGHEST) + b2)
    return (f * score[:, :, None, None]).astype(feat.dtype)


if __name__ == "__main__":
    # Small shapes consistent with the module: feat is (B, C, H, W), C == in_features,
    # B a multiple of num_views.  F = num_views * C = 128 (lane-aligned), H*W = 256
    # (multiple of 128), grouped batch Bg = 4 -> grid length 2 with Bg_tile = 2.
    num_views = 2
    C = 64                     # in_features per view
    B = 8                      # total batch -> grouped batch Bg = 4
    H = Wsp = 16
    F = num_views * C          # 128

    key = jax.random.PRNGKey(0)
    kf, k1, k2, k3, k4 = jax.random.split(key, 5)

    feat = jax.random.normal(kf, (B, C, H, Wsp), dtype=jnp.float32)
    lim = 1.0 / (F ** 0.5)     # nn.Linear default init scale (deterministic here)
    w1 = jax.random.uniform(k1, (F, F), jnp.float32, -lim, lim)
    b1 = jax.random.uniform(k2, (F,), jnp.float32, -lim, lim)
    w2 = jax.random.uniform(k3, (F, F), jnp.float32, -lim, lim)
    b2 = jax.random.uniform(k4, (F,), jnp.float32, -lim, lim)

    out = adapter_forward(feat, w1, b1, w2, b2, num_views=num_views)
    out = jax.block_until_ready(out)

    ref = _reference(feat, w1, b1, w2, b2, num_views)
    assert out.shape == (B // num_views, F, H, Wsp)
    assert jnp.allclose(out, ref, atol=1e-4, rtol=1e-4), float(jnp.max(jnp.abs(out - ref)))

    print("KERNEL_OK")
</pallas_src>

<mosaic_0001>
module attributes {stable_mosaic.version = 11 : i64} {
  func.func @_adapter_kernel(%arg0: i32, %arg1: memref<2x128x256xf32, #tpu.memory_space<vmem>>, %arg2: memref<128x128xf32, #tpu.memory_space<vmem>>, %arg3: memref<1x128xf32, #tpu.memory_space<vmem>>, %arg4: memref<128x128xf32, #tpu.memory_space<vmem>>, %arg5: memref<1x128xf32, #tpu.memory_space<vmem>>, %arg6: memref<2x128x256xf32, #tpu.memory_space<vmem>>) attributes {dimension_semantics = [#tpu.dimension_semantics<parallel>], iteration_bounds = array<i64: 2>, scalar_prefetch = 0 : i64, scratch_operands = 0 : i64, tpu.core_type = #tpu.core_type<tc>, window_params = [{transform_indices = @transform_0, window_bounds = array<i64: 2, 128, 256>}, {pipeline_mode = #tpu.pipeline_mode<synchronous>, transform_indices = @transform_1, window_bounds = array<i64: 128, 128>}, {pipeline_mode = #tpu.pipeline_mode<synchronous>, transform_indices = @transform_2, window_bounds = array<i64: 1, 128>}, {pipeline_mode = #tpu.pipeline_mode<synchronous>, transform_indices = @transform_3, window_bounds = array<i64: 128, 128>}, {pipeline_mode = #tpu.pipeline_mode<synchronous>, transform_indices = @transform_4, window_bounds = array<i64: 1, 128>}, {transform_indices = @transform_5, window_bounds = array<i64: 2, 128, 256>}]} {
    %c0 = arith.constant 0 : index
    %c0_0 = arith.constant 0 : index
    %c0_1 = arith.constant 0 : index
    %0 = vector.load %arg1[%c0, %c0_0, %c0_1] : memref<2x128x256xf32, #tpu.memory_space<vmem>>, vector<2x128x256xf32>
    %cst = arith.constant dense<0.000000e+00> : vector<2x128xf32>
    %1 = vector.multi_reduction <add>, %0, %cst [2] : vector<2x128x256xf32> to vector<2x128xf32>
    %cst_2 = arith.constant 3.906250e-03 : f32
    %2 = vector.broadcast %cst_2 : f32 to vector<2x128xf32>
    %3 = arith.mulf %1, %2 : vector<2x128xf32>
    %c0_3 = arith.constant 0 : index
    %c0_4 = arith.constant 0 : index
    %4 = vector.load %arg2[%c0_3, %c0_4] : memref<128x128xf32, #tpu.memory_space<vmem>>, vector<128x128xf32>
    %cst_5 = arith.constant dense<0.000000e+00> : vector<2x128xf32>
    %5 = tpu.matmul %3, %4, %cst_5 {dimension_numbers = #tpu.dot_dimension_numbers<[1], [0], [0], [1], [0, 0, 1, 1], [], []>, precision = #tpu.contract_precision<fp32>} : vector<2x128xf32>, vector<128x128xf32>, vector<2x128xf32> -> vector<2x128xf32>
    %c0_6 = arith.constant 0 : index
    %c0_7 = arith.constant 0 : index
    %6 = vector.load %arg3[%c0_6, %c0_7] : memref<1x128xf32, #tpu.memory_space<vmem>>, vector<1x128xf32>
    %7 = vector.broadcast %6 : vector<1x128xf32> to vector<2x128xf32>
    %8 = arith.addf %5, %7 : vector<2x128xf32>
    %cst_8 = arith.constant 0.000000e+00 : f32
    %9 = vector.broadcast %cst_8 : f32 to vector<2x128xf32>
    %10 = arith.maximumf %8, %9 : vector<2x128xf32>
    %c0_9 = arith.constant 0 : index
    %c0_10 = arith.constant 0 : index
    %11 = vector.load %arg4[%c0_9, %c0_10] : memref<128x128xf32, #tpu.memory_space<vmem>>, vector<128x128xf32>
    %cst_11 = arith.constant dense<0.000000e+00> : vector<2x128xf32>
    %12 = tpu.matmul %10, %11, %cst_11 {dimension_numbers = #tpu.dot_dimension_numbers<[1], [0], [0], [1], [0, 0, 1, 1], [], []>, precision = #tpu.contract_precision<fp32>} : vector<2x128xf32>, vector<128x128xf32>, vector<2x128xf32> -> vector<2x128xf32>
    %c0_12 = arith.constant 0 : index
    %c0_13 = arith.constant 0 : index
    %13 = vector.load %arg5[%c0_12, %c0_13] : memref<1x128xf32, #tpu.memory_space<vmem>>, vector<1x128xf32>
    %14 = vector.broadcast %13 : vector<1x128xf32> to vector<2x128xf32>
    %15 = arith.addf %12, %14 : vector<2x128xf32>
    %16 = arith.negf %15 : vector<2x128xf32>
    %17 = math.exp %16 : vector<2x128xf32>
    %cst_14 = arith.constant 1.000000e+00 : f32
    %18 = vector.broadcast %cst_14 : f32 to vector<2x128xf32>
    %19 = arith.addf %18, %17 : vector<2x128xf32>
    %20 = arith.divf %18, %19 : vector<2x128xf32>
    %c0_15 = arith.constant 0 : index
    %c0_16 = arith.constant 0 : index
    %c0_17 = arith.constant 0 : index
    %21 = vector.load %arg1[%c0_15, %c0_16, %c0_17] : memref<2x128x256xf32, #tpu.memory_space<vmem>>, vector<2x128x256xf32>
    %22 = vector.shape_cast %20 : vector<2x128xf32> to vector<2x128x1xf32>
    %23 = vector.broadcast %22 : vector<2x128x1xf32> to vector<2x128x256xf32>
    %24 = arith.mulf %21, %23 : vector<2x128x256xf32>
    %c0_18 = arith.constant 0 : index
    %c0_19 = arith.constant 0 : index
    %c0_20 = arith.constant 0 : index
    %25 = vector.load %arg6[%c0_18, %c0_19, %c0_20] : memref<2x128x256xf32, #tpu.memory_space<vmem>>, vector<2x128x256xf32>
    tpu.vector_store %arg6[%c0_18, %c0_19, %c0_20], %24 {strides = array<i32>} : memref<2x128x256xf32, #tpu.memory_space<vmem>>, vector<2x128x256xf32>,
    return
  }
  func.func @transform_0(%arg0: i32) -> (i32, i32, i32) {
    %c0_i32 = arith.constant 0 : i32
    %c0_i32_0 = arith.constant 0 : i32
    %c0_i32_1 = arith.constant 0 : i32
    return %arg0, %c0_i32, %c0_i32_0 : i32, i32, i32
  }
  func.func @transform_1(%arg0: i32) -> (i32, i32) {
    %c0_i32 = arith.constant 0 : i32
    %c0_i32_0 = arith.constant 0 : i32
    %c0_i32_1 = arith.constant 0 : i32
    return %c0_i32, %c0_i32_0 : i32, i32
  }
  func.func @transform_2(%arg0: i32) -> (i32, i32) {
    %c0_i32 = arith.constant 0 : i32
    %c0_i32_0 = arith.constant 0 : i32
    %c0_i32_1 = arith.constant 0 : i32
    return %c0_i32, %c0_i32_0 : i32, i32
  }
  func.func @transform_3(%arg0: i32) -> (i32, i32) {
    %c0_i32 = arith.constant 0 : i32
    %c0_i32_0 = arith.constant 0 : i32
    %c0_i32_1 = arith.constant 0 : i32
    return %c0_i32, %c0_i32_0 : i32, i32
  }
  func.func @transform_4(%arg0: i32) -> (i32, i32) {
    %c0_i32 = arith.constant 0 : i32
    %c0_i32_0 = arith.constant 0 : i32
    %c0_i32_1 = arith.constant 0 : i32
    return %c0_i32, %c0_i32_0 : i32, i32
  }
  func.func @transform_5(%arg0: i32) -> (i32, i32, i32) {
    %c0_i32 = arith.constant 0 : i32
    %c0_i32_0 = arith.constant 0 : i32
    %c0_i32_1 = arith.constant 0 : i32
    return %arg0, %c0_i32, %c0_i32_0 : i32, i32, i32
  }
}

</mosaic_0001>

<llo_original>
// kernel: tpu_custom_call.1
$region0: #{tpu_custom_call.1}
  #allocation0 [shape = 'u32[]', space=smem, size = 0x4, offset = 0x4, fixed_abs, tag = 'smem constant byte address 0x4 - core index']
  #allocation1 [shape = 'u32[72,128]{1,0:T(1,128)}', space=vmem, size = 0x9000, scoped, tag = 'internal scratch']
  %s0 = inlined_call_operand.hbm [shape: f32[4,128,256], index: 0, kind: input, shape index: {}]
  %s1 = inlined_call_operand.hbm [shape: f32[128,128], index: 1, kind: input, shape index: {}]
  %s2 = inlined_call_operand.vmem [shape: f32[1,128], index: 2, kind: input, shape index: {}]
  %s3 = inlined_call_operand.hbm [shape: f32[128,128], index: 3, kind: input, shape index: {}]
  %s4 = inlined_call_operand.vmem [shape: f32[1,128], index: 4, kind: input, shape index: {}]
  %s5 = inlined_call_operand.hbm [shape: f32[4,128,256], index: 5, kind: output, shape index: {}]
  %s6 = sld [smem:[#allocation0]]
  $region65: #{tpu_custom_call.1} parent=0
    _
  %s8 = ssub.s32 1, %s6
  %s9 = scalar_select 0, %s8, %s6
  $region1: #{tpu_custom_call.1} parent=0
    #allocation2 [shape = 'u8[524288]{0}', space=vmem, size = 0x80000, scoped, tag = 'input window, operand 0']
    #allocation3 [shape = 's32[2]{0}', space=sflag, size = 0x8, scoped, tag = 'scoped memory for tpu_custom_call.1']
    #allocation4 [shape = 's32[2]{0}', space=sflag, size = 0x8, scoped, tag = 'scoped memory for tpu_custom_call.1']
    #allocation5 [shape = 'u8[65536]{0}', space=vmem, size = 0x10000, scoped, tag = 'input window, operand 1, single buffered']
    #allocation6 [shape = 's32[1]{0}', space=sflag, size = 0x4, scoped, tag = 'scoped memory for tpu_custom_call.1']
    #allocation7 [shape = 'u8[65536]{0}', space=vmem, size = 0x10000, scoped, tag = 'input window, operand 3, single buffered']
    #allocation8 [shape = 'u8[524288]{0}', space=vmem, size = 0x80000, scoped, tag = 'output window, operand 0']
    %10 = vsyncpa [#allocation3], 0
    %s11 = scalar_lea.sflag [#allocation3], 1
    %12 = vsyncpa %s11, 0
    %13 = vsyncpa [#allocation6], 0
    %14 = vsyncpa [#allocation4], 0
    %s15 = scalar_lea.sflag [#allocation4], 1
    %16 = vsyncpa %s15, 0
    loop: start=0, step=1, limit=4
    $region2: #{tpu_custom_call.1} parent=1 // loop_pre_header
      _
    $region3: #{tpu_custom_call.1} parent=1 // loop_header
      %s18 = sphi 0, %s22
      %p19 = scmp.ge.s32.totalorder %s18, 4
      %s28 = sphi 0, %s30
      %s31 = sphi 0, %s28
      %s32 = sphi 0, %s31
      %s48 = sphi 0, %s32
      %s52 = sphi 0, %s52
      %s54 = sphi 0, %s52
      %s55 = sphi 0, %s54
      %s69 = sphi 0, %s55
      %s73 = sphi 0, %s73
      %s75 = sphi 0, %s73
      %s76 = sphi 0, %s75
      %s90 = sphi 0, %s76
      %s94 = sphi 0, %s94
      %s96 = sphi 0, %s94
      %s97 = sphi 0, %s96
      %s111 = sphi 0, %s97
      %s115 = sphi 0, %s115
      %s117 = sphi 0, %s115
      %s118 = sphi 0, %s117
      %s132 = sphi 0, %s118
      %s138 = sphi 0, %s140
      %s141 = sphi 0, %s138
      %s142 = sphi 0, %s141
      %s158 = sphi 0, %s142
    $region4: #{tpu_custom_call.1} parent=1 // loop_header_branch
      %21 = sbr.rel (%p19) target = $region8
    $region5: #{tpu_custom_call.1} parent=1 // loop_body
      %s23 = ssub.s32 %s18, 1
      %s24 = ssub.s32 %s18, 2
      %s25 = sadd.s32 %s18, 1
      %s26 = ssub.s32 %s18, %s25
      %p27 = scmp.eq.s32.totalorder %s26, 0
      %s29 = sadd.s32 %s28, 1
      %s30 = scalar_select %p27, %s28, %s29
      %p33 = pneg %p27
      %p34 = scmp.eq.s32.totalorder %s18, 1
      %p35 = por %p33, %p34
      %p36 = scmp.ne.s32.totalorder %s28, %s31
      %p37 = scmp.eq.s32.totalorder %s18, 0
      %p38 = por %p36, %p37
      %p39 = scmp.ne.s32.totalorder %s28, %s31
      %p40 = scmp.eq.s32.totalorder %s23, 1
      %p41 = por %p39, %p40
      %p42 = scmp.ne.s32.totalorder %s31, %s32
      %p43 = scmp.eq.s32.totalorder %s23, 0
      %p44 = por %p42, %p43
      %p45 = scmp.ne.s32.totalorder %s31, %s32
      %p46 = scmp.eq.s32.totalorder %s24, 1
      %p47 = por %p45, %p46
      %p49 = scmp.ne.s32.totalorder %s32, %s48
      %p50 = scmp.eq.s32.totalorder %s24, 0
      %p51 = por %p49, %p50
      %s53 = sadd.s32 %s52, 1
      %p56 = scmp.eq.s32.totalorder %s18, 1
      %p57 = scmp.ne.s32.totalorder %s52, %s54
      %p58 = scmp.eq.s32.totalorder %s18, 0
      %p59 = por %p57, %p58
      %p60 = scmp.ne.s32.totalorder %s52, %s54
      %p61 = scmp.eq.s32.totalorder %s23, 1
      %p62 = por %p60, %p61
      %p63 = scmp.ne.s32.totalorder %s54, %s55
      %p64 = scmp.eq.s32.totalorder %s23, 0
      %p65 = por %p63, %p64
      %p66 = scmp.ne.s32.totalorder %s54, %s55
      %p67 = scmp.eq.s32.totalorder %s24, 1
      %p68 = por %p66, %p67
      %p70 = scmp.ne.s32.totalorder %s55, %s69
      %p71 = scmp.eq.s32.totalorder %s24, 0
      %p72 = por %p70, %p71
      %s74 = sadd.s32 %s73, 1
      %p77 = scmp.eq.s32.totalorder %s18, 1
      %p78 = scmp.ne.s32.totalorder %s73, %s75
      %p79 = scmp.eq.s32.totalorder %s18, 0
      %p80 = por %p78, %p79
      %p81 = scmp.ne.s32.totalorder %s73, %s75
      %p82 = scmp.eq.s32.totalorder %s23, 1
      %p83 = por %p81, %p82
      %p84 = scmp.ne.s32.totalorder %s75, %s76
      %p85 = scmp.eq.s32.totalorder %s23, 0
      %p86 = por %p84, %p85
      %p87 = scmp.ne.s32.totalorder %s75, %s76
      %p88 = scmp.eq.s32.totalorder %s24, 1
      %p89 = por %p87, %p88
      %p91 = scmp.ne.s32.totalorder %s76, %s90
      %p92 = scmp.eq.s32.totalorder %s24, 0
      %p93 = por %p91, %p92
      %s95 = sadd.s32 %s94, 1
      %p98 = scmp.eq.s32.totalorder %s18, 1
      %p99 = scmp.ne.s32.totalorder %s94, %s96
      %p100 = scmp.eq.s32.totalorder %s18, 0
      %p101 = por %p99, %p100
      %p102 = scmp.ne.s32.totalorder %s94, %s96
      %p103 = scmp.eq.s32.totalorder %s23, 1
      %p104 = por %p102, %p103
      %p105 = scmp.ne.s32.totalorder %s96, %s97
      %p106 = scmp.eq.s32.totalorder %s23, 0
      %p107 = por %p105, %p106
      %p108 = scmp.ne.s32.totalorder %s96, %s97
      %p109 = scmp.eq.s32.totalorder %s24, 1
      %p110 = por %p108, %p109
      %p112 = scmp.ne.s32.totalorder %s97, %s111
      %p113 = scmp.eq.s32.totalorder %s24, 0
      %p114 = por %p112, %p113
      %s116 = sadd.s32 %s115, 1
      %p119 = scmp.eq.s32.totalorder %s18, 1
      %p120 = scmp.ne.s32.totalorder %s115, %s117
      %p121 = scmp.eq.s32.totalorder %s18, 0
      %p122 = por %p120, %p121
      %p123 = scmp.ne.s32.totalorder %s115, %s117
      %p124 = scmp.eq.s32.totalorder %s23, 1
      %p125 = por %p123, %p124
      %p126 = scmp.ne.s32.totalorder %s117, %s118
      %p127 = scmp.eq.s32.totalorder %s23, 0
      %p128 = por %p126, %p127
      %p129 = scmp.ne.s32.totalorder %s117, %s118
      %p130 = scmp.eq.s32.totalorder %s24, 1
      %p131 = por %p129, %p130
      %p133 = scmp.ne.s32.totalorder %s118, %s132
      %p134 = scmp.eq.s32.totalorder %s24, 0
      %p135 = por %p133, %p134
      %s136 = ssub.s32 %s18, %s25
      %p137 = scmp.eq.s32.totalorder %s136, 0
      %s139 = sadd.s32 %s138, 1
      %s140 = scalar_select %p137, %s138, %s139
      %p143 = pneg %p137
      %p144 = scmp.eq.s32.totalorder %s18, 1
      %p145 = por %p143, %p144
      %p146 = scmp.ne.s32.totalorder %s138, %s141
      %p147 = scmp.eq.s32.totalorder %s18, 0
      %p148 = por %p146, %p147
      %p149 = scmp.ne.s32.totalorder %s138, %s141
      %p150 = scmp.eq.s32.totalorder %s23, 1
      %p151 = por %p149, %p150
      %p152 = scmp.ne.s32.totalorder %s141, %s142
      %p153 = scmp.eq.s32.totalorder %s23, 0
      %p154 = por %p152, %p153
      %p155 = scmp.ne.s32.totalorder %s141, %s142
      %p156 = scmp.eq.s32.totalorder %s24, 1
      %p157 = por %p155, %p156
      %p159 = scmp.ne.s32.totalorder %s142, %s158
      %p160 = scmp.eq.s32.totalorder %s24, 0
      %p161 = por %p159, %p160
      %p162 = scmp.le.s32.totalorder 1, %s18
      %p163 = scmp.lt.s32.totalorder %s18, 3
      %p164 = pnand %p162, %p163
      %p165 = pneg %p164
      // Predicated region
      $region9: #{tpu_custom_call.1} parent=5 // pred_check
        _
      $region10: #{tpu_custom_call.1} parent=5 // pred_check_branch
        %167 = sbr.rel (%p164) target = $region12
      $region11: #{tpu_custom_call.1} parent=5 // pred_region
        %s168 = ssub.s32 %s18, 1
        // Predicated region
        $region13: #{tpu_custom_call.1} parent=11 // pred_check
          %p169 = pneg %p65
        $region14: #{tpu_custom_call.1} parent=11 // pred_check_branch
          %171 = sbr.rel (%p169) target = $region16
        $region15: #{tpu_custom_call.1} parent=11 // pred_region
          %173 = vsyncadd [#allocation6], 0
          %s174 = sshll.u32 %s1, 4
          %s175 = int_to_ptr.hbm [resolvable:$true] %s174
          %s176 = sshll.u32 [#allocation5], 4
          %s177 = int_to_ptr.vmem [resolvable:$true] %s176
          %182 = dma.hbm_to_vmem [thread:$0]  %s175, 2048, %s177, [#allocation6], 128, 128, 8
        $region16: #{tpu_custom_call.1} parent=11 // pred_fallthru
          _
        // Predicated region
        $region17: #{tpu_custom_call.1} parent=11 // pred_check
          %p183 = pneg %p86
        $region18: #{tpu_custom_call.1} parent=11 // pred_check_branch
          %185 = sbr.rel (%p183) target = $region20
        $region19: #{tpu_custom_call.1} parent=11 // pred_region
          _
        $region20: #{tpu_custom_call.1} parent=11 // pred_fallthru
          _
        // Predicated region
        $region21: #{tpu_custom_call.1} parent=11 // pred_check
          %p186 = pneg %p107
        $region22: #{tpu_custom_call.1} parent=11 // pred_check_branch
          %188 = sbr.rel (%p186) target = $region24
        $region23: #{tpu_custom_call.1} parent=11 // pred_region
          %190 = vsyncadd [#allocation6], 0
          %s191 = sshll.u32 %s3, 4
          %s192 = int_to_ptr.hbm [resolvable:$true] %s191
          %s193 = sshll.u32 [#allocation7], 4
          %s194 = int_to_ptr.vmem [resolvable:$true] %s193
          %199 = dma.hbm_to_vmem [thread:$0]  %s192, 2048, %s194, [#allocation6], 128, 128, 8
        $region24: #{tpu_custom_call.1} parent=11 // pred_fallthru
          _
        // Predicated region
        $region25: #{tpu_custom_call.1} parent=11 // pred_check
          %p200 = pneg %p128
        $region26: #{tpu_custom_call.1} parent=11 // pred_check_branch
          %202 = sbr.rel (%p200) target = $region28
        $region27: #{tpu_custom_call.1} parent=11 // pred_region
          _
        $region28: #{tpu_custom_call.1} parent=11 // pred_fallthru
          _
      $region12: #{tpu_custom_call.1} parent=5 // pred_fallthru
        _
      %p203 = scmp.lt.s32.totalorder %s18, 2
      // Predicated region
      $region29: #{tpu_custom_call.1} parent=5 // pred_check
        %p204 = pneg %p203
      $region30: #{tpu_custom_call.1} parent=5 // pred_check_branch
        %206 = sbr.rel (%p204) target = $region32
      $region31: #{tpu_custom_call.1} parent=5 // pred_region
        // Predicated region
        $region33: #{tpu_custom_call.1} parent=31 // pred_check
          %p207 = pneg %p38
        $region34: #{tpu_custom_call.1} parent=31 // pred_check_branch
          %209 = sbr.rel (%p207) target = $region36
        $region35: #{tpu_custom_call.1} parent=31 // pred_region
          %s210 = sand.u32 %s28, 1
          %s211 = scalar_lea.sflag [#allocation3], %s210
          %s212 = sand.u32 %s28, 1
          %s213 = smul.addr %s212, 512
          %s214 = scalar_lea.vmem [#allocation2], %s213
          %s215 = smul.u32 2, %s18
          %217 = vsyncadd %s211, 0
          %s218 = smul.addr %s215, 32
          %s219 = smul.addr %s218, 8
          %s220 = scalar_lea.hbm %s0, %s219
          %s221 = sshll.u32 %s220, 4
          %s222 = int_to_ptr.hbm [resolvable:$true] %s221
          %s223 = sshll.u32 %s214, 4
          %s224 = int_to_ptr.vmem [resolvable:$true] %s223
          %229 = dma.hbm_to_vmem [thread:$0]  %s222, 8192, %s224, %s211, 256, 256, 16
        $region36: #{tpu_custom_call.1} parent=31 // pred_fallthru
          _
      $region32: #{tpu_custom_call.1} parent=5 // pred_fallthru
        _
      %p230 = scmp.le.s32.totalorder 1, %s18
      %p231 = scmp.lt.s32.totalorder %s18, 3
      %p232 = pnand %p230, %p231
      %p233 = pneg %p232
      // Predicated region
      $region37: #{tpu_custom_call.1} parent=5 // pred_check
        _
      $region38: #{tpu_custom_call.1} parent=5 // pred_check_branch
        %235 = sbr.rel (%p232) target = $region40
      $region39: #{tpu_custom_call.1} parent=5 // pred_region
        %s236 = ssub.s32 %s18, 1
        %s237 = sand.u32 %s31, 1
        %s238 = scalar_lea.sflag [#allocation3], %s237
        %s239 = sand.u32 %s31, 1
        %s240 = smul.addr %s239, 512
        %s241 = scalar_lea.vmem [#allocation2], %s240
        // Predicated region
        $region41: #{tpu_custom_call.1} parent=39 // pred_check
          %p242 = pneg %p44
        $region42: #{tpu_custom_call.1} parent=39 // pred_check_branch
          %244 = sbr.rel (%p242) target = $region44
        $region43: #{tpu_custom_call.1} parent=39 // pred_region
          %246 = dma.done %s238, 8192
        $region44: #{tpu_custom_call.1} parent=39 // pred_fallthru
          _
        // Predicated region
        $region45: #{tpu_custom_call.1} parent=39 // pred_check
          %p247 = pneg %p65
        $region46: #{tpu_custom_call.1} parent=39 // pred_check_branch
          %249 = sbr.rel (%p247) target = $region48
        $region47: #{tpu_custom_call.1} parent=39 // pred_region
          %251 = dma.done [#allocation6], 2048
        $region48: #{tpu_custom_call.1} parent=39 // pred_fallthru
          _
        // Predicated region
        $region49: #{tpu_custom_call.1} parent=39 // pred_check
          %p252 = pneg %p107
        $region50: #{tpu_custom_call.1} parent=39 // pred_check_branch
          %254 = sbr.rel (%p252) target = $region52
        $region51: #{tpu_custom_call.1} parent=39 // pred_region
          %256 = dma.done [#allocation6], 2048
        $region52: #{tpu_custom_call.1} parent=39 // pred_fallthru
          _
        %s257 = sand.u32 %s31, 1
        %s258 = scalar_lea.sflag [#allocation3], %s257
        %s259 = sand.u32 %s31, 1
        %s260 = smul.addr %s259, 512
        %s261 = scalar_lea.vmem [#allocation2], %s260
        %p262 = pneg %p44
        %p263 = pneg %p41
        %p264 = pneg %p65
        %p265 = pneg %p62
        %p266 = pneg %p86
        %p267 = pneg %p83
        %p268 = pneg %p107
        %p269 = pneg %p104
        %p270 = pneg %p128
        %p271 = pneg %p125
        %p272 = pneg %p154
        %p273 = pneg %p151
        %s274 = sand.u32 %s141, 1
        %s275 = scalar_lea.sflag [#allocation4], %s274
        %s276 = sand.u32 %s141, 1
        %s277 = smul.addr %s276, 512
        %s278 = scalar_lea.vmem [#allocation8], %s277
        %s279 = smul.u32 2, %s23
        %s280 = smul.u32 2, %s23
        %v281 = vld [vmem:[%s241] sm:$0xff]
        %v282 = vld [vmem:[%s241 + $0x8] sm:$0xff]
        %v283 = vld [vmem:[%s241 + $0x10] sm:$0xff]
        %v284 = vld [vmem:[%s241 + $0x18] sm:$0xff]
        %v285 = vld [vmem:[%s241 + $0x20] sm:$0xff]
        %v286 = vld [vmem:[%s241 + $0x28] sm:$0xff]
        %v287 = vld [vmem:[%s241 + $0x30] sm:$0xff]
        %v288 = vld [vmem:[%s241 + $0x38] sm:$0xff]
        %v289 = vld [vmem:[%s241 + $0x40] sm:$0xff]
        %v290 = vld [vmem:[%s241 + $0x48] sm:$0xff]
        %v291 = vld [vmem:[%s241 + $0x50] sm:$0xff]
        %v292 = vld [vmem:[%s241 + $0x58] sm:$0xff]
        %v293 = vld [vmem:[%s241 + $0x60] sm:$0xff]
        %v294 = vld [vmem:[%s241 + $0x68] sm:$0xff]
        %v295 = vld [vmem:[%s241 + $0x70] sm:$0xff]
        %v296 = vld [vmem:[%s241 + $0x78] sm:$0xff]
        %v297 = vld [vmem:[%s241 + $0x80] sm:$0xff]
        %v298 = vld [vmem:[%s241 + $0x88] sm:$0xff]
        %v299 = vld [vmem:[%s241 + $0x90] sm:$0xff]
        %v300 = vld [vmem:[%s241 + $0x98] sm:$0xff]
        %v301 = vld [vmem:[%s241 + $0xa0] sm:$0xff]
        %v302 = vld [vmem:[%s241 + $0xa8] sm:$0xff]
        %v303 = vld [vmem:[%s241 + $0xb0] sm:$0xff]
        %v304 = vld [vmem:[%s241 + $0xb8] sm:$0xff]
        %v305 = vld [vmem:[%s241 + $0xc0] sm:$0xff]
        %v306 = vld [vmem:[%s241 + $0xc8] sm:$0xff]
        %v307 = vld [vmem:[%s241 + $0xd0] sm:$0xff]
        %v308 = vld [vmem:[%s241 + $0xd8] sm:$0xff]
        %v309 = vld [vmem:[%s241 + $0xe0] sm:$0xff]
        %v310 = vld [vmem:[%s241 + $0xe8] sm:$0xff]
        %v311 = vld [vmem:[%s241 + $0xf0] sm:$0xff]
        %v312 = vld [vmem:[%s241 + $0xf8] sm:$0xff]
        %v313 = vld [vmem:[%s241 + $0x100] sm:$0xff]
        %v314 = vld [vmem:[%s241 + $0x108] sm:$0xff]
        %v315 = vld [vmem:[%s241 + $0x110] sm:$0xff]
        %v316 = vld [vmem:[%s241 + $0x118] sm:$0xff]
        %v317 = vld [vmem:[%s241 + $0x120] sm:$0xff]
        %v318 = vld [vmem:[%s241 + $0x128] sm:$0xff]
        %v319 = vld [vmem:[%s241 + $0x130] sm:$0xff]
        %v320 = vld [vmem:[%s241 + $0x138] sm:$0xff]
        %v321 = vld [vmem:[%s241 + $0x140] sm:$0xff]
        %v322 = vld [vmem:[%s241 + $0x148] sm:$0xff]
        %v323 = vld [vmem:[%s241 + $0x150] sm:$0xff]
        %v324 = vld [vmem:[%s241 + $0x158] sm:$0xff]
        %v325 = vld [vmem:[%s241 + $0x160] sm:$0xff]
        %v326 = vld [vmem:[%s241 + $0x168] sm:$0xff]
        %v327 = vld [vmem:[%s241 + $0x170] sm:$0xff]
        %v328 = vld [vmem:[%s241 + $0x178] sm:$0xff]
        %v329 = vld [vmem:[%s241 + $0x180] sm:$0xff]
        %v330 = vld [vmem:[%s241 + $0x188] sm:$0xff]
        %v331 = vld [vmem:[%s241 + $0x190] sm:$0xff]
        %v332 = vld [vmem:[%s241 + $0x198] sm:$0xff]
        %v333 = vld [vmem:[%s241 + $0x1a0] sm:$0xff]
        %v334 = vld [vmem:[%s241 + $0x1a8] sm:$0xff]
        %v335 = vld [vmem:[%s241 + $0x1b0] sm:$0xff]
        %v336 = vld [vmem:[%s241 + $0x1b8] sm:$0xff]
        %v337 = vld [vmem:[%s241 + $0x1c0] sm:$0xff]
        %v338 = vld [vmem:[%s241 + $0x1c8] sm:$0xff]
        %v339 = vld [vmem:[%s241 + $0x1d0] sm:$0xff]
        %v340 = vld [vmem:[%s241 + $0x1d8] sm:$0xff]
        %v341 = vld [vmem:[%s241 + $0x1e0] sm:$0xff]
        %v342 = vld [vmem:[%s241 + $0x1e8] sm:$0xff]
        %v343 = vld [vmem:[%s241 + $0x1f0] sm:$0xff]
        %v344 = vld [vmem:[%s241 + $0x1f8] sm:$0xff]
        %v345 = vadd.f32 %v281, %v282
        %346 = vadd.xlane.f32.xlu0 %v345
        %v347 = vpop.xlane.xlu0 %346
        %v348 = vadd.f32 %v283, %v284
        %349 = vadd.xlane.f32.xlu0 %v348
        %v350 = vpop.xlane.xlu0 %349
        %v351 = vadd.f32 %v285, %v286
        %352 = vadd.xlane.f32.xlu0 %v351
        %v353 = vpop.xlane.xlu0 %352
        %v354 = vadd.f32 %v287, %v288
        %355 = vadd.xlane.f32.xlu0 %v354
        %v356 = vpop.xlane.xlu0 %355
        %v357 = vadd.f32 %v289, %v290
        %358 = vadd.xlane.f32.xlu0 %v357
        %v359 = vpop.xlane.xlu0 %358
        %v360 = vadd.f32 %v291, %v292
        %361 = vadd.xlane.f32.xlu0 %v360
        %v362 = vpop.xlane.xlu0 %361
        %v363 = vadd.f32 %v293, %v294
        %364 = vadd.xlane.f32.xlu0 %v363
        %v365 = vpop.xlane.xlu0 %364
        %v366 = vadd.f32 %v295, %v296
        %367 = vadd.xlane.f32.xlu0 %v366
        %v368 = vpop.xlane.xlu0 %367
        %v369 = vadd.f32 %v297, %v298
        %370 = vadd.xlane.f32.xlu0 %v369
        %v371 = vpop.xlane.xlu0 %370
        %v372 = vadd.f32 %v299, %v300
        %373 = vadd.xlane.f32.xlu0 %v372
        %v374 = vpop.xlane.xlu0 %373
        %v375 = vadd.f32 %v301, %v302
        %376 = vadd.xlane.f32.xlu0 %v375
        %v377 = vpop.xlane.xlu0 %376
        %v378 = vadd.f32 %v303, %v304
        %379 = vadd.xlane.f32.xlu0 %v378
        %v380 = vpop.xlane.xlu0 %379
        %v381 = vadd.f32 %v305, %v306
        %382 = vadd.xlane.f32.xlu0 %v381
        %v383 = vpop.xlane.xlu0 %382
        %v384 = vadd.f32 %v307, %v308
        %385 = vadd.xlane.f32.xlu0 %v384
        %v386 = vpop.xlane.xlu0 %385
        %v387 = vadd.f32 %v309, %v310
        %388 = vadd.xlane.f32.xlu0 %v387
        %v389 = vpop.xlane.xlu0 %388
        %v390 = vadd.f32 %v311, %v312
        %391 = vadd.xlane.f32.xlu0 %v390
        %v392 = vpop.xlane.xlu0 %391
        %v393 = vadd.f32 %v313, %v314
        %394 = vadd.xlane.f32.xlu0 %v393
        %v395 = vpop.xlane.xlu0 %394
        %v396 = vadd.f32 %v315, %v316
        %397 = vadd.xlane.f32.xlu0 %v396
        %v398 = vpop.xlane.xlu0 %397
        %v399 = vadd.f32 %v317, %v318
        %400 = vadd.xlane.f32.xlu0 %v399
        %v401 = vpop.xlane.xlu0 %400
        %v402 = vadd.f32 %v319, %v320
        %403 = vadd.xlane.f32.xlu0 %v402
        %v404 = vpop.xlane.xlu0 %403
        %v405 = vadd.f32 %v321, %v322
        %406 = vadd.xlane.f32.xlu0 %v405
        %v407 = vpop.xlane.xlu0 %406
        %v408 = vadd.f32 %v323, %v324
        %409 = vadd.xlane.f32.xlu0 %v408
        %v410 = vpop.xlane.xlu0 %409
        %v411 = vadd.f32 %v325, %v326
        %412 = vadd.xlane.f32.xlu0 %v411
        %v413 = vpop.xlane.xlu0 %412
        %v414 = vadd.f32 %v327, %v328
        %415 = vadd.xlane.f32.xlu0 %v414
        %v416 = vpop.xlane.xlu0 %415
        %v417 = vadd.f32 %v329, %v330
        %418 = vadd.xlane.f32.xlu0 %v417
        %v419 = vpop.xlane.xlu0 %418
        %v420 = vadd.f32 %v331, %v332
        %421 = vadd.xlane.f32.xlu0 %v420
        %v422 = vpop.xlane.xlu0 %421
        %v423 = vadd.f32 %v333, %v334
        %424 = vadd.xlane.f32.xlu0 %v423
        %v425 = vpop.xlane.xlu0 %424
        %v426 = vadd.f32 %v335, %v336
        %427 = vadd.xlane.f32.xlu0 %v426
        %v428 = vpop.xlane.xlu0 %427
        %v429 = vadd.f32 %v337, %v338
        %430 = vadd.xlane.f32.xlu0 %v429
        %v431 = vpop.xlane.xlu0 %430
        %v432 = vadd.f32 %v339, %v340
        %433 = vadd.xlane.f32.xlu0 %v432
        %v434 = vpop.xlane.xlu0 %433
        %v435 = vadd.f32 %v341, %v342
        %436 = vadd.xlane.f32.xlu0 %v435
        %v437 = vpop.xlane.xlu0 %436
        %v438 = vadd.f32 %v343, %v344
        %439 = vadd.xlane.f32.xlu0 %v438
        %v440 = vpop.xlane.xlu0 %439
        %v441 = vmul.f32 %v347, 0.00390625
        %v442 = vmul.f32 %v350, 0.00390625
        %v443 = vmul.f32 %v353, 0.00390625
        %v444 = vmul.f32 %v356, 0.00390625
        %v445 = vmul.f32 %v359, 0.00390625
        %v446 = vmul.f32 %v362, 0.00390625
        %v447 = vmul.f32 %v365, 0.00390625
        %v448 = vmul.f32 %v368, 0.00390625
        %v449 = vmul.f32 %v371, 0.00390625
        %v450 = vmul.f32 %v374, 0.00390625
        %v451 = vmul.f32 %v377, 0.00390625
        %v452 = vmul.f32 %v380, 0.00390625
        %v453 = vmul.f32 %v383, 0.00390625
        %v454 = vmul.f32 %v386, 0.00390625
        %v455 = vmul.f32 %v389, 0.00390625
        %v456 = vmul.f32 %v392, 0.00390625
        %v457 = vmul.f32 %v395, 0.00390625
        %v458 = vmul.f32 %v398, 0.00390625
        %v459 = vmul.f32 %v401, 0.00390625
        %v460 = vmul.f32 %v404, 0.00390625
        %v461 = vmul.f32 %v407, 0.00390625
        %v462 = vmul.f32 %v410, 0.00390625
        %v463 = vmul.f32 %v413, 0.00390625
        %v464 = vmul.f32 %v416, 0.00390625
        %v465 = vmul.f32 %v419, 0.00390625
        %v466 = vmul.f32 %v422, 0.00390625
        %v467 = vmul.f32 %v425, 0.00390625
        %v468 = vmul.f32 %v428, 0.00390625
        %v469 = vmul.f32 %v431, 0.00390625
        %v470 = vmul.f32 %v434, 0.00390625
        %v471 = vmul.f32 %v437, 0.00390625
        %v472 = vmul.f32 %v440, 0.00390625
        %v473 = vld [vmem:[#allocation5] sm:$0xff]
        %v474 = vld [vmem:[#allocation5 + $0x8] sm:$0xff]
        %v475 = vld [vmem:[#allocation5 + $0x10] sm:$0xff]
        %v476 = vld [vmem:[#allocation5 + $0x18] sm:$0xff]
        %v477 = vld [vmem:[#allocation5 + $0x20] sm:$0xff]
        %v478 = vld [vmem:[#allocation5 + $0x28] sm:$0xff]
        %v479 = vld [vmem:[#allocation5 + $0x30] sm:$0xff]
        %v480 = vld [vmem:[#allocation5 + $0x38] sm:$0xff]
        %v481 = vld [vmem:[#allocation5 + $0x40] sm:$0xff]
        %v482 = vld [vmem:[#allocation5 + $0x48] sm:$0xff]
        %v483 = vld [vmem:[#allocation5 + $0x50] sm:$0xff]
        %v484 = vld [vmem:[#allocation5 + $0x58] sm:$0xff]
        %v485 = vld [vmem:[#allocation5 + $0x60] sm:$0xff]
        %v486 = vld [vmem:[#allocation5 + $0x68] sm:$0xff]
        %v487 = vld [vmem:[#allocation5 + $0x70] sm:$0xff]
        %v488 = vld [vmem:[#allocation5 + $0x78] sm:$0xff]
        %v489 = vld [vmem:[%s2] sm:$0x1]
        %v491 = vperm.slane %v489, 0
        %v525 = vlaneseq
        %v526 = vand.u32 %v525, 127
        %v527 = vperm.slane %v441, %v526
        %v528 = vadd.s32 %v526, 4294967288
        %v529 = vperm.slane %v442, %v528
        %vm530 = vcmask 130112
        %v531 = vsel %vm530, %v529, %v527
        %v532 = vadd.s32 %v526, 4294967280
        %v533 = vperm.slane %v443, %v532
        %vm534 = vcmask 195712
        %v535 = vsel %vm534, %v533, %v531
        %v536 = vadd.s32 %v526, 4294967272
        %v537 = vperm.slane %v444, %v536
        %vm538 = vcmask 261312
        %v539 = vsel %vm538, %v537, %v535
        %v540 = vadd.s32 %v526, 4294967264
        %v541 = vperm.slane %v445, %v540
        %vm542 = vcmask 326912
        %v543 = vsel %vm542, %v541, %v539
        %v544 = vadd.s32 %v526, 4294967256
        %v545 = vperm.slane %v446, %v544
        %vm546 = vcmask 392512
        %v547 = vsel %vm546, %v545, %v543
        %v548 = vadd.s32 %v526, 4294967248
        %v549 = vperm.slane %v447, %v548
        %vm550 = vcmask 458112
        %v551 = vsel %vm550, %v549, %v547
        %v552 = vadd.s32 %v526, 4294967240
        %v553 = vperm.slane %v448, %v552
        %vm554 = vcmask 523712
        %v555 = vsel %vm554, %v553, %v551
        %v556 = vadd.s32 %v526, 4294967232
        %v557 = vperm.slane %v449, %v556
        %vm558 = vcmask 589312
        %v559 = vsel %vm558, %v557, %v555
        %v560 = vadd.s32 %v526, 4294967224
        %v561 = vperm.slane %v450, %v560
        %vm562 = vcmask 654912
        %v563 = vsel %vm562, %v561, %v559
        %v564 = vadd.s32 %v526, 4294967216
        %v565 = vperm.slane %v451, %v564
        %vm566 = vcmask 720512
        %v567 = vsel %vm566, %v565, %v563
        %v568 = vadd.s32 %v526, 4294967208
        %v569 = vperm.slane %v452, %v568
        %vm570 = vcmask 786112
        %v571 = vsel %vm570, %v569, %v567
        %v572 = vadd.s32 %v526, 4294967200
        %v573 = vperm.slane %v453, %v572
        %vm574 = vcmask 851712
        %v575 = vsel %vm574, %v573, %v571
        %v576 = vadd.s32 %v526, 4294967192
        %v577 = vperm.slane %v454, %v576
        %vm578 = vcmask 917312
        %v579 = vsel %vm578, %v577, %v575
        %v580 = vadd.s32 %v526, 4294967184
        %v581 = vperm.slane %v455, %v580
        %vm582 = vcmask 982912
        %v583 = vsel %vm582, %v581, %v579
        %v584 = vadd.s32 %v526, 4294967176
        %v585 = vperm.slane %v456, %v584
        %vm586 = vcmask 1048512
        %v587 = vsel %vm586, %v585, %v583
        %v588 = vperm.slane %v457, %v526
        %v589 = vperm.slane %v458, %v528
        %v590 = vsel %vm530, %v589, %v588
        %v591 = vperm.slane %v459, %v532
        %v592 = vsel %vm534, %v591, %v590
        %v593 = vperm.slane %v460, %v536
        %v594 = vsel %vm538, %v593, %v592
        %v595 = vperm.slane %v461, %v540
        %v596 = vsel %vm542, %v595, %v594
        %v597 = vperm.slane %v462, %v544
        %v598 = vsel %vm546, %v597, %v596
        %v599 = vperm.slane %v463, %v548
        %v600 = vsel %vm550, %v599, %v598
        %v601 = vperm.slane %v464, %v552
        %v602 = vsel %vm554, %v601, %v600
        %v603 = vperm.slane %v465, %v556
        %v604 = vsel %vm558, %v603, %v602
        %v605 = vperm.slane %v466, %v560
        %v606 = vsel %vm562, %v605, %v604
        %v607 = vperm.slane %v467, %v564
        %v608 = vsel %vm566, %v607, %v606
        %v609 = vperm.slane %v468, %v568
        %v610 = vsel %vm570, %v609, %v608
        %v611 = vperm.slane %v469, %v572
        %v612 = vsel %vm574, %v611, %v610
        %v613 = vperm.slane %v470, %v576
        %v614 = vsel %vm578, %v613, %v612
        %v615 = vperm.slane %v471, %v580
        %v616 = vsel %vm582, %v615, %v614
        %v617 = vperm.slane %v472, %v584
        %v618 = vsel %vm586, %v617, %v616
        %vm619 = vcmask 1041409
        %v620 = vsel %vm619, %v618, %v587
        %v622 = vand.u32 %v488, 4294901760
        %623 = vmatpush.msra.mxu0 %v622
        %v624 = vand.u32 %v487, 4294901760
        %625 = vmatpush.msra.mxu0 %v624
        %v626 = vand.u32 %v486, 4294901760
        %627 = vmatpush.msra.mxu0 %v626
        %v628 = vand.u32 %v485, 4294901760
        %629 = vmatpush.msra.mxu0 %v628
        %v630 = vand.u32 %v484, 4294901760
        %631 = vmatpush.msra.mxu0 %v630
        %v632 = vand.u32 %v483, 4294901760
        %633 = vmatpush.msra.mxu0 %v632
        %v634 = vand.u32 %v482, 4294901760
        %635 = vmatpush.msra.mxu0 %v634
        %v636 = vand.u32 %v481, 4294901760
        %637 = vmatpush.msra.mxu0 %v636
        %v638 = vand.u32 %v480, 4294901760
        %639 = vmatpush.msra.mxu0 %v638
        %v640 = vand.u32 %v479, 4294901760
        %641 = vmatpush.msra.mxu0 %v640
        %v642 = vand.u32 %v478, 4294901760
        %643 = vmatpush.msra.mxu0 %v642
        %v644 = vand.u32 %v477, 4294901760
        %645 = vmatpush.msra.mxu0 %v644
        %v646 = vand.u32 %v476, 4294901760
        %647 = vmatpush.msra.mxu0 %v646
        %v648 = vand.u32 %v475, 4294901760
        %649 = vmatpush.msra.mxu0 %v648
        %v650 = vand.u32 %v474, 4294901760
        %651 = vmatpush.msra.mxu0 %v650
        %v652 = vand.u32 %v473, 4294901760
        %653 = vmatpush.msra.mxu0 %v652
        %v654 = vand.u32 %v620, 4294901760
        %v655 = vsub.f32 %v620, %v654
        %v656 = vand.u32 %v655, 4294901760
        %v657 = vsub.f32 %v655, %v656
        %v658 = vand.u32 %v657, 4294901760
        %659 = vmatmul.f32.gmra.mxu0 %v658
        %v660 = vpop.f32.mrf.mxu0
        %v661 = vadd.f32 %v491, %v660
        %662 = vdwg.mxu0
        %v663 = vand.u32 %v488, 4294901760
        %v664 = vsub.f32 %v488, %v663
        %v665 = vand.u32 %v664, 4294901760
        %v666 = vsub.f32 %v664, %v665
        %v667 = vand.u32 %v666, 4294901760
        %668 = vmatpush.msra.mxu0 %v667
        %v669 = vand.u32 %v487, 4294901760
        %v670 = vsub.f32 %v487, %v669
        %v671 = vand.u32 %v670, 4294901760
        %v672 = vsub.f32 %v670, %v671
        %v673 = vand.u32 %v672, 4294901760
        %674 = vmatpush.msra.mxu0 %v673
        %v675 = vand.u32 %v486, 4294901760
        %v676 = vsub.f32 %v486, %v675
        %v677 = vand.u32 %v676, 4294901760
        %v678 = vsub.f32 %v676, %v677
        %v679 = vand.u32 %v678, 4294901760
        %680 = vmatpush.msra.mxu0 %v679
        %v681 = vand.u32 %v485, 4294901760
        %v682 = vsub.f32 %v485, %v681
        %v683 = vand.u32 %v682, 4294901760
        %v684 = vsub.f32 %v682, %v683
        %v685 = vand.u32 %v684, 4294901760
        %686 = vmatpush.msra.mxu0 %v685
        %v687 = vand.u32 %v484, 4294901760
        %v688 = vsub.f32 %v484, %v687
        %v689 = vand.u32 %v688, 4294901760
        %v690 = vsub.f32 %v688, %v689
        %v691 = vand.u32 %v690, 4294901760
        %692 = vmatpush.msra.mxu0 %v691
        %v693 = vand.u32 %v483, 4294901760
        %v694 = vsub.f32 %v483, %v693
        %v695 = vand.u32 %v694, 4294901760
        %v696 = vsub.f32 %v694, %v695
        %v697 = vand.u32 %v696, 4294901760
        %698 = vmatpush.msra.mxu0 %v697
        %v699 = vand.u32 %v482, 4294901760
        %v700 = vsub.f32 %v482, %v699
        %v701 = vand.u32 %v700, 4294901760
        %v702 = vsub.f32 %v700, %v701
        %v703 = vand.u32 %v702, 4294901760
        %704 = vmatpush.msra.mxu0 %v703
        %v705 = vand.u32 %v481, 4294901760
        %v706 = vsub.f32 %v481, %v705
        %v707 = vand.u32 %v706, 4294901760
        %v708 = vsub.f32 %v706, %v707
        %v709 = vand.u32 %v708, 4294901760
        %710 = vmatpush.msra.mxu0 %v709
        %v711 = vand.u32 %v480, 4294901760
        %v712 = vsub.f32 %v480, %v711
        %v713 = vand.u32 %v712, 4294901760
        %v714 = vsub.f32 %v712, %v713
        %v715 = vand.u32 %v714, 4294901760
        %716 = vmatpush.msra.mxu0 %v715
        %v717 = vand.u32 %v479, 4294901760
        %v718 = vsub.f32 %v479, %v717
        %v719 = vand.u32 %v718, 4294901760
        %v720 = vsub.f32 %v718, %v719
        %v721 = vand.u32 %v720, 4294901760
        %722 = vmatpush.msra.mxu0 %v721
        %v723 = vand.u32 %v478, 4294901760
        %v724 = vsub.f32 %v478, %v723
        %v725 = vand.u32 %v724, 4294901760
        %v726 = vsub.f32 %v724, %v725
        %v727 = vand.u32 %v726, 4294901760
        %728 = vmatpush.msra.mxu0 %v727
        %v729 = vand.u32 %v477, 4294901760
        %v730 = vsub.f32 %v477, %v729
        %v731 = vand.u32 %v730, 4294901760
        %v732 = vsub.f32 %v730, %v731
        %v733 = vand.u32 %v732, 4294901760
        %734 = vmatpush.msra.mxu0 %v733
        %v735 = vand.u32 %v476, 4294901760
        %v736 = vsub.f32 %v476, %v735
        %v737 = vand.u32 %v736, 4294901760
        %v738 = vsub.f32 %v736, %v737
        %v739 = vand.u32 %v738, 4294901760
        %740 = vmatpush.msra.mxu0 %v739
        %v741 = vand.u32 %v475, 4294901760
        %v742 = vsub.f32 %v475, %v741
        %v743 = vand.u32 %v742, 4294901760
        %v744 = vsub.f32 %v742, %v743
        %v745 = vand.u32 %v744, 4294901760
        %746 = vmatpush.msra.mxu0 %v745
        %v747 = vand.u32 %v474, 4294901760
        %v748 = vsub.f32 %v474, %v747
        %v749 = vand.u32 %v748, 4294901760
        %v750 = vsub.f32 %v748, %v749
        %v751 = vand.u32 %v750, 4294901760
        %752 = vmatpush.msra.mxu0 %v751
        %v753 = vand.u32 %v473, 4294901760
        %v754 = vsub.f32 %v473, %v753
        %v755 = vand.u32 %v754, 4294901760
        %v756 = vsub.f32 %v754, %v755
        %v757 = vand.u32 %v756, 4294901760
        %758 = vmatpush.msra.mxu0 %v757
        %v759 = vand.u32 %v620, 4294901760
        %760 = vmatmul.f32.gmra.mxu0 %v759
        %v761 = vpop.f32.mrf.mxu0
        %v762 = vadd.f32 %v661, %v761
        %763 = vdwg.mxu0
        %v764 = vand.u32 %v488, 4294901760
        %v765 = vsub.f32 %v488, %v764
        %766 = vmatpush.msra.mxu0 %v765
        %v767 = vand.u32 %v487, 4294901760
        %v768 = vsub.f32 %v487, %v767
        %769 = vmatpush.msra.mxu0 %v768
        %v770 = vand.u32 %v486, 4294901760
        %v771 = vsub.f32 %v486, %v770
        %772 = vmatpush.msra.mxu0 %v771
        %v773 = vand.u32 %v485, 4294901760
        %v774 = vsub.f32 %v485, %v773
        %775 = vmatpush.msra.mxu0 %v774
        %v776 = vand.u32 %v484, 4294901760
        %v777 = vsub.f32 %v484, %v776
        %778 = vmatpush.msra.mxu0 %v777
        %v779 = vand.u32 %v483, 4294901760
        %v780 = vsub.f32 %v483, %v779
        %781 = vmatpush.msra.mxu0 %v780
        %v782 = vand.u32 %v482, 4294901760
        %v783 = vsub.f32 %v482, %v782
        %784 = vmatpush.msra.mxu0 %v783
        %v785 = vand.u32 %v481, 4294901760
        %v786 = vsub.f32 %v481, %v785
        %787 = vmatpush.msra.mxu0 %v786
        %v788 = vand.u32 %v480, 4294901760
        %v789 = vsub.f32 %v480, %v788
        %790 = vmatpush.msra.mxu0 %v789
        %v791 = vand.u32 %v479, 4294901760
        %v792 = vsub.f32 %v479, %v791
        %793 = vmatpush.msra.mxu0 %v792
        %v794 = vand.u32 %v478, 4294901760
        %v795 = vsub.f32 %v478, %v794
        %796 = vmatpush.msra.mxu0 %v795
        %v797 = vand.u32 %v477, 4294901760
        %v798 = vsub.f32 %v477, %v797
        %799 = vmatpush.msra.mxu0 %v798
        %v800 = vand.u32 %v476, 4294901760
        %v801 = vsub.f32 %v476, %v800
        %802 = vmatpush.msra.mxu0 %v801
        %v803 = vand.u32 %v475, 4294901760
        %v804 = vsub.f32 %v475, %v803
        %805 = vmatpush.msra.mxu0 %v804
        %v806 = vand.u32 %v474, 4294901760
        %v807 = vsub.f32 %v474, %v806
        %808 = vmatpush.msra.mxu0 %v807
        %v809 = vand.u32 %v473, 4294901760
        %v810 = vsub.f32 %v473, %v809
        %811 = vmatpush.msra.mxu0 %v810
        %v812 = vand.u32 %v620, 4294901760
        %v813 = vsub.f32 %v620, %v812
        %814 = vmatmul.f32.gmra.mxu0 %v813
        %v815 = vpop.f32.mrf.mxu0
        %v816 = vadd.f32 %v762, %v815
        %817 = vdwg.mxu0
        %v818 = vand.u32 %v488, 4294901760
        %819 = vmatpush.msra.mxu0 %v818
        %v820 = vand.u32 %v487, 4294901760
        %821 = vmatpush.msra.mxu0 %v820
        %v822 = vand.u32 %v486, 4294901760
        %823 = vmatpush.msra.mxu0 %v822
        %v824 = vand.u32 %v485, 4294901760
        %825 = vmatpush.msra.mxu0 %v824
        %v826 = vand.u32 %v484, 4294901760
        %827 = vmatpush.msra.mxu0 %v826
        %v828 = vand.u32 %v483, 4294901760
        %829 = vmatpush.msra.mxu0 %v828
        %v830 = vand.u32 %v482, 4294901760
        %831 = vmatpush.msra.mxu0 %v830
        %v832 = vand.u32 %v481, 4294901760
        %833 = vmatpush.msra.mxu0 %v832
        %v834 = vand.u32 %v480, 4294901760
        %835 = vmatpush.msra.mxu0 %v834
        %v836 = vand.u32 %v479, 4294901760
        %837 = vmatpush.msra.mxu0 %v836
        %v838 = vand.u32 %v478, 4294901760
        %839 = vmatpush.msra.mxu0 %v838
        %v840 = vand.u32 %v477, 4294901760
        %841 = vmatpush.msra.mxu0 %v840
        %v842 = vand.u32 %v476, 4294901760
        %843 = vmatpush.msra.mxu0 %v842
        %v844 = vand.u32 %v475, 4294901760
        %845 = vmatpush.msra.mxu0 %v844
        %v846 = vand.u32 %v474, 4294901760
        %847 = vmatpush.msra.mxu0 %v846
        %v848 = vand.u32 %v473, 4294901760
        %849 = vmatpush.msra.mxu0 %v848
        %v850 = vand.u32 %v620, 4294901760
        %v851 = vsub.f32 %v620, %v850
        %v852 = vand.u32 %v851, 4294901760
        %853 = vmatmul.f32.gmra.mxu0 %v852
        %v854 = vpop.f32.mrf.mxu0
        %v855 = vadd.f32 %v816, %v854
        %856 = vdwg.mxu0
        %v857 = vand.u32 %v488, 4294901760
        %v858 = vsub.f32 %v488, %v857
        %v859 = vand.u32 %v858, 4294901760
        %860 = vmatpush.msra.mxu0 %v859
        %v861 = vand.u32 %v487, 4294901760
        %v862 = vsub.f32 %v487, %v861
        %v863 = vand.u32 %v862, 4294901760
        %864 = vmatpush.msra.mxu0 %v863
        %v865 = vand.u32 %v486, 4294901760
        %v866 = vsub.f32 %v486, %v865
        %v867 = vand.u32 %v866, 4294901760
        %868 = vmatpush.msra.mxu0 %v867
        %v869 = vand.u32 %v485, 4294901760
        %v870 = vsub.f32 %v485, %v869
        %v871 = vand.u32 %v870, 4294901760
        %872 = vmatpush.msra.mxu0 %v871
        %v873 = vand.u32 %v484, 4294901760
        %v874 = vsub.f32 %v484, %v873
        %v875 = vand.u32 %v874, 4294901760
        %876 = vmatpush.msra.mxu0 %v875
        %v877 = vand.u32 %v483, 4294901760
        %v878 = vsub.f32 %v483, %v877
        %v879 = vand.u32 %v878, 4294901760
        %880 = vmatpush.msra.mxu0 %v879
        %v881 = vand.u32 %v482, 4294901760
        %v882 = vsub.f32 %v482, %v881
        %v883 = vand.u32 %v882, 4294901760
        %884 = vmatpush.msra.mxu0 %v883
        %v885 = vand.u32 %v481, 4294901760
        %v886 = vsub.f32 %v481, %v885
        %v887 = vand.u32 %v886, 4294901760
        %888 = vmatpush.msra.mxu0 %v887
        %v889 = vand.u32 %v480, 4294901760
        %v890 = vsub.f32 %v480, %v889
        %v891 = vand.u32 %v890, 4294901760
        %892 = vmatpush.msra.mxu0 %v891
        %v893 = vand.u32 %v479, 4294901760
        %v894 = vsub.f32 %v479, %v893
        %v895 = vand.u32 %v894, 4294901760
        %896 = vmatpush.msra.mxu0 %v895
        %v897 = vand.u32 %v478, 4294901760
        %v898 = vsub.f32 %v478, %v897
        %v899 = vand.u32 %v898, 4294901760
        %900 = vmatpush.msra.mxu0 %v899
        %v901 = vand.u32 %v477, 4294901760
        %v902 = vsub.f32 %v477, %v901
        %v903 = vand.u32 %v902, 4294901760
        %904 = vmatpush.msra.mxu0 %v903
        %v905 = vand.u32 %v476, 4294901760
        %v906 = vsub.f32 %v476, %v905
        %v907 = vand.u32 %v906, 4294901760
        %908 = vmatpush.msra.mxu0 %v907
        %v909 = vand.u32 %v475, 4294901760
        %v910 = vsub.f32 %v475, %v909
        %v911 = vand.u32 %v910, 4294901760
        %912 = vmatpush.msra.mxu0 %v911
        %v913 = vand.u32 %v474, 4294901760
        %v914 = vsub.f32 %v474, %v913
        %v915 = vand.u32 %v914, 4294901760
        %916 = vmatpush.msra.mxu0 %v915
        %v917 = vand.u32 %v473, 4294901760
        %v918 = vsub.f32 %v473, %v917
        %v919 = vand.u32 %v918, 4294901760
        %920 = vmatpush.msra.mxu0 %v919
        %v921 = vand.u32 %v620, 4294901760
        %922 = vmatmul.f32.gmra.mxu0 %v921
        %v923 = vpop.f32.mrf.mxu0
        %v924 = vadd.f32 %v855, %v923
        %925 = vdwg.mxu0
        %v926 = vand.u32 %v488, 4294901760
        %927 = vmatpush.msra.mxu0 %v926
        %v928 = vand.u32 %v487, 4294901760
        %929 = vmatpush.msra.mxu0 %v928
        %v930 = vand.u32 %v486, 4294901760
        %931 = vmatpush.msra.mxu0 %v930
        %v932 = vand.u32 %v485, 4294901760
        %933 = vmatpush.msra.mxu0 %v932
        %v934 = vand.u32 %v484, 4294901760
        %935 = vmatpush.msra.mxu0 %v934
        %v936 = vand.u32 %v483, 4294901760
        %937 = vmatpush.msra.mxu0 %v936
        %v938 = vand.u32 %v482, 4294901760
        %939 = vmatpush.msra.mxu0 %v938
        %v940 = vand.u32 %v481, 4294901760
        %941 = vmatpush.msra.mxu0 %v940
        %v942 = vand.u32 %v480, 4294901760
        %943 = vmatpush.msra.mxu0 %v942
        %v944 = vand.u32 %v479, 4294901760
        %945 = vmatpush.msra.mxu0 %v944
        %v946 = vand.u32 %v478, 4294901760
        %947 = vmatpush.msra.mxu0 %v946
        %v948 = vand.u32 %v477, 4294901760
        %949 = vmatpush.msra.mxu0 %v948
        %v950 = vand.u32 %v476, 4294901760
        %951 = vmatpush.msra.mxu0 %v950
        %v952 = vand.u32 %v475, 4294901760
        %953 = vmatpush.msra.mxu0 %v952
        %v954 = vand.u32 %v474, 4294901760
        %955 = vmatpush.msra.mxu0 %v954
        %v956 = vand.u32 %v473, 4294901760
        %957 = vmatpush.msra.mxu0 %v956
        %v958 = vand.u32 %v620, 4294901760
        %959 = vmatmul.f32.gmra.mxu0 %v958
        %v960 = vpop.f32.mrf.mxu0
        %v961 = vadd.f32 %v924, %v960
        %962 = vdwg.mxu0
        %v963 = vmax.f32 %v961, 0.0
        %v964 = vld [vmem:[#allocation7] sm:$0xff]
        %v965 = vld [vmem:[#allocation7 + $0x8] sm:$0xff]
        %v966 = vld [vmem:[#allocation7 + $0x10] sm:$0xff]
        %v967 = vld [vmem:[#allocation7 + $0x18] sm:$0xff]
        %v968 = vld [vmem:[#allocation7 + $0x20] sm:$0xff]
        %v969 = vld [vmem:[#allocation7 + $0x28] sm:$0xff]
        %v970 = vld [vmem:[#allocation7 + $0x30] sm:$0xff]
        %v971 = vld [vmem:[#allocation7 + $0x38] sm:$0xff]
        %v972 = vld [vmem:[#allocation7 + $0x40] sm:$0xff]
        %v973 = vld [vmem:[#allocation7 + $0x48] sm:$0xff]
        %v974 = vld [vmem:[#allocation7 + $0x50] sm:$0xff]
        %v975 = vld [vmem:[#allocation7 + $0x58] sm:$0xff]
        %v976 = vld [vmem:[#allocation7 + $0x60] sm:$0xff]
        %v977 = vld [vmem:[#allocation7 + $0x68] sm:$0xff]
        %v978 = vld [vmem:[#allocation7 + $0x70] sm:$0xff]
        %v979 = vld [vmem:[#allocation7 + $0x78] sm:$0xff]
        %v980 = vld [vmem:[%s4] sm:$0x1]
        %v982 = vperm.slane %v980, 0
        %v984 = vand.u32 %v979, 4294901760
        %985 = vmatpush.msra.mxu0 %v984
        %v986 = vand.u32 %v978, 4294901760
        %987 = vmatpush.msra.mxu0 %v986
        %v988 = vand.u32 %v977, 4294901760
        %989 = vmatpush.msra.mxu0 %v988
        %v990 = vand.u32 %v976, 4294901760
        %991 = vmatpush.msra.mxu0 %v990
        %v992 = vand.u32 %v975, 4294901760
        %993 = vmatpush.msra.mxu0 %v992
        %v994 = vand.u32 %v974, 4294901760
        %995 = vmatpush.msra.mxu0 %v994
        %v996 = vand.u32 %v973, 4294901760
        %997 = vmatpush.msra.mxu0 %v996
        %v998 = vand.u32 %v972, 4294901760
        %999 = vmatpush.msra.mxu0 %v998
        %v1000 = vand.u32 %v971, 4294901760
        %1001 = vmatpush.msra.mxu0 %v1000
        %v1002 = vand.u32 %v970, 4294901760
        %1003 = vmatpush.msra.mxu0 %v1002
        %v1004 = vand.u32 %v969, 4294901760
        %1005 = vmatpush.msra.mxu0 %v1004
        %v1006 = vand.u32 %v968, 4294901760
        %1007 = vmatpush.msra.mxu0 %v1006
        %v1008 = vand.u32 %v967, 4294901760
        %1009 = vmatpush.msra.mxu0 %v1008
        %v1010 = vand.u32 %v966, 4294901760
        %1011 = vmatpush.msra.mxu0 %v1010
        %v1012 = vand.u32 %v965, 4294901760
        %1013 = vmatpush.msra.mxu0 %v1012
        %v1014 = vand.u32 %v964, 4294901760
        %1015 = vmatpush.msra.mxu0 %v1014
        %v1016 = vand.u32 %v963, 4294901760
        %v1017 = vsub.f32 %v963, %v1016
        %v1018 = vand.u32 %v1017, 4294901760
        %v1019 = vsub.f32 %v1017, %v1018
        %v1020 = vand.u32 %v1019, 4294901760
        %1021 = vmatmul.f32.gmra.mxu0 %v1020
        %v1022 = vpop.f32.mrf.mxu0
        %v1023 = vadd.f32 %v982, %v1022
        %1024 = vdwg.mxu0
        %v1025 = vand.u32 %v979, 4294901760
        %v1026 = vsub.f32 %v979, %v1025
        %v1027 = vand.u32 %v1026, 4294901760
        %v1028 = vsub.f32 %v1026, %v1027
        %v1029 = vand.u32 %v1028, 4294901760
        %1030 = vmatpush.msra.mxu0 %v1029
        %v1031 = vand.u32 %v978, 4294901760
        %v1032 = vsub.f32 %v978, %v1031
        %v1033 = vand.u32 %v1032, 4294901760
        %v1034 = vsub.f32 %v1032, %v1033
        %v1035 = vand.u32 %v1034, 4294901760
        %1036 = vmatpush.msra.mxu0 %v1035
        %v1037 = vand.u32 %v977, 4294901760
        %v1038 = vsub.f32 %v977, %v1037
        %v1039 = vand.u32 %v1038, 4294901760
        %v1040 = vsub.f32 %v1038, %v1039
        %v1041 = vand.u32 %v1040, 4294901760
        %1042 = vmatpush.msra.mxu0 %v1041
        %v1043 = vand.u32 %v976, 4294901760
        %v1044 = vsub.f32 %v976, %v1043
        %v1045 = vand.u32 %v1044, 4294901760
        %v1046 = vsub.f32 %v1044, %v1045
        %v1047 = vand.u32 %v1046, 4294901760
        %1048 = vmatpush.msra.mxu0 %v1047
        %v1049 = vand.u32 %v975, 4294901760
        %v1050 = vsub.f32 %v975, %v1049
        %v1051 = vand.u32 %v1050, 4294901760
        %v1052 = vsub.f32 %v1050, %v1051
        %v1053 = vand.u32 %v1052, 4294901760
        %1054 = vmatpush.msra.mxu0 %v1053
        %v1055 = vand.u32 %v974, 4294901760
        %v1056 = vsub.f32 %v974, %v1055
        %v1057 = vand.u32 %v1056, 4294901760
        %v1058 = vsub.f32 %v1056, %v1057
        %v1059 = vand.u32 %v1058, 4294901760
        %1060 = vmatpush.msra.mxu0 %v1059
        %v1061 = vand.u32 %v973, 4294901760
        %v1062 = vsub.f32 %v973, %v1061
        %v1063 = vand.u32 %v1062, 4294901760
        %v1064 = vsub.f32 %v1062, %v1063
        %v1065 = vand.u32 %v1064, 4294901760
        %1066 = vmatpush.msra.mxu0 %v1065
        %v1067 = vand.u32 %v972, 4294901760
        %v1068 = vsub.f32 %v972, %v1067
        %v1069 = vand.u32 %v1068, 4294901760
        %v1070 = vsub.f32 %v1068, %v1069
        %v1071 = vand.u32 %v1070, 4294901760
        %1072 = vmatpush.msra.mxu0 %v1071
        %v1073 = vand.u32 %v971, 4294901760
        %v1074 = vsub.f32 %v971, %v1073
        %v1075 = vand.u32 %v1074, 4294901760
        %v1076 = vsub.f32 %v1074, %v1075
        %v1077 = vand.u32 %v1076, 4294901760
        %1078 = vmatpush.msra.mxu0 %v1077
        %v1079 = vand.u32 %v970, 4294901760
        %v1080 = vsub.f32 %v970, %v1079
        %v1081 = vand.u32 %v1080, 4294901760
        %v1082 = vsub.f32 %v1080, %v1081
        %v1083 = vand.u32 %v1082, 4294901760
        %1084 = vmatpush.msra.mxu0 %v1083
        %v1085 = vand.u32 %v969, 4294901760
        %v1086 = vsub.f32 %v969, %v1085
        %v1087 = vand.u32 %v1086, 4294901760
        %v1088 = vsub.f32 %v1086, %v1087
        %v1089 = vand.u32 %v1088, 4294901760
        %1090 = vmatpush.msra.mxu0 %v1089
        %v1091 = vand.u32 %v968, 4294901760
        %v1092 = vsub.f32 %v968, %v1091
        %v1093 = vand.u32 %v1092, 4294901760
        %v1094 = vsub.f32 %v1092, %v1093
        %v1095 = vand.u32 %v1094, 4294901760
        %1096 = vmatpush.msra.mxu0 %v1095
        %v1097 = vand.u32 %v967, 4294901760
        %v1098 = vsub.f32 %v967, %v1097
        %v1099 = vand.u32 %v1098, 4294901760
        %v1100 = vsub.f32 %v1098, %v1099
        %v1101 = vand.u32 %v1100, 4294901760
        %1102 = vmatpush.msra.mxu0 %v1101
        %v1103 = vand.u32 %v966, 4294901760
        %v1104 = vsub.f32 %v966, %v1103
        %v1105 = vand.u32 %v1104, 4294901760
        %v1106 = vsub.f32 %v1104, %v1105
        %v1107 = vand.u32 %v1106, 4294901760
        %1108 = vmatpush.msra.mxu0 %v1107
        %v1109 = vand.u32 %v965, 4294901760
        %v1110 = vsub.f32 %v965, %v1109
        %v1111 = vand.u32 %v1110, 4294901760
        %v1112 = vsub.f32 %v1110, %v1111
        %v1113 = vand.u32 %v1112, 4294901760
        %1114 = vmatpush.msra.mxu0 %v1113
        %v1115 = vand.u32 %v964, 4294901760
        %v1116 = vsub.f32 %v964, %v1115
        %v1117 = vand.u32 %v1116, 4294901760
        %v1118 = vsub.f32 %v1116, %v1117
        %v1119 = vand.u32 %v1118, 4294901760
        %1120 = vmatpush.msra.mxu0 %v1119
        %v1121 = vand.u32 %v963, 4294901760
        %1122 = vmatmul.f32.gmra.mxu0 %v1121
        %v1123 = vpop.f32.mrf.mxu0
        %v1124 = vadd.f32 %v1023, %v1123
        %1125 = vdwg.mxu0
        %v1126 = vand.u32 %v979, 4294901760
        %v1127 = vsub.f32 %v979, %v1126
        %1128 = vmatpush.msra.mxu0 %v1127
        %v1129 = vand.u32 %v978, 4294901760
        %v1130 = vsub.f32 %v978, %v1129
        %1131 = vmatpush.msra.mxu0 %v1130
        %v1132 = vand.u32 %v977, 4294901760
        %v1133 = vsub.f32 %v977, %v1132
        %1134 = vmatpush.msra.mxu0 %v1133
        %v1135 = vand.u32 %v976, 4294901760
        %v1136 = vsub.f32 %v976, %v1135
        %1137 = vmatpush.msra.mxu0 %v1136
        %v1138 = vand.u32 %v975, 4294901760
        %v1139 = vsub.f32 %v975, %v1138
        %1140 = vmatpush.msra.mxu0 %v1139
        %v1141 = vand.u32 %v974, 4294901760
        %v1142 = vsub.f32 %v974, %v1141
        %1143 = vmatpush.msra.mxu0 %v1142
        %v1144 = vand.u32 %v973, 4294901760
        %v1145 = vsub.f32 %v973, %v1144
        %1146 = vmatpush.msra.mxu0 %v1145
        %v1147 = vand.u32 %v972, 4294901760
        %v1148 = vsub.f32 %v972, %v1147
        %1149 = vmatpush.msra.mxu0 %v1148
        %v1150 = vand.u32 %v971, 4294901760
        %v1151 = vsub.f32 %v971, %v1150
        %1152 = vmatpush.msra.mxu0 %v1151
        %v1153 = vand.u32 %v970, 4294901760
        %v1154 = vsub.f32 %v970, %v1153
        %1155 = vmatpush.msra.mxu0 %v1154
        %v1156 = vand.u32 %v969, 4294901760
        %v1157 = vsub.f32 %v969, %v1156
        %1158 = vmatpush.msra.mxu0 %v1157
        %v1159 = vand.u32 %v968, 4294901760
        %v1160 = vsub.f32 %v968, %v1159
        %1161 = vmatpush.msra.mxu0 %v1160
        %v1162 = vand.u32 %v967, 4294901760
        %v1163 = vsub.f32 %v967, %v1162
        %1164 = vmatpush.msra.mxu0 %v1163
        %v1165 = vand.u32 %v966, 4294901760
        %v1166 = vsub.f32 %v966, %v1165
        %1167 = vmatpush.msra.mxu0 %v1166
        %v1168 = vand.u32 %v965, 4294901760
        %v1169 = vsub.f32 %v965, %v1168
        %1170 = vmatpush.msra.mxu0 %v1169
        %v1171 = vand.u32 %v964, 4294901760
        %v1172 = vsub.f32 %v964, %v1171
        %1173 = vmatpush.msra.mxu0 %v1172
        %v1174 = vand.u32 %v963, 4294901760
        %v1175 = vsub.f32 %v963, %v1174
        %1176 = vmatmul.f32.gmra.mxu0 %v1175
        %v1177 = vpop.f32.mrf.mxu0
        %v1178 = vadd.f32 %v1124, %v1177
        %1179 = vdwg.mxu0
        %v1180 = vand.u32 %v979, 4294901760
        %1181 = vmatpush.msra.mxu0 %v1180
        %v1182 = vand.u32 %v978, 4294901760
        %1183 = vmatpush.msra.mxu0 %v1182
        %v1184 = vand.u32 %v977, 4294901760
        %1185 = vmatpush.msra.mxu0 %v1184
        %v1186 = vand.u32 %v976, 4294901760
        %1187 = vmatpush.msra.mxu0 %v1186
        %v1188 = vand.u32 %v975, 4294901760
        %1189 = vmatpush.msra.mxu0 %v1188
        %v1190 = vand.u32 %v974, 4294901760
        %1191 = vmatpush.msra.mxu0 %v1190
        %v1192 = vand.u32 %v973, 4294901760
        %1193 = vmatpush.msra.mxu0 %v1192
        %v1194 = vand.u32 %v972, 4294901760
        %1195 = vmatpush.msra.mxu0 %v1194
        %v1196 = vand.u32 %v971, 4294901760
        %1197 = vmatpush.msra.mxu0 %v1196
        %v1198 = vand.u32 %v970, 4294901760
        %1199 = vmatpush.msra.mxu0 %v1198
        %v1200 = vand.u32 %v969, 4294901760
        %1201 = vmatpush.msra.mxu0 %v1200
        %v1202 = vand.u32 %v968, 4294901760
        %1203 = vmatpush.msra.mxu0 %v1202
        %v1204 = vand.u32 %v967, 4294901760
        %1205 = vmatpush.msra.mxu0 %v1204
        %v1206 = vand.u32 %v966, 4294901760
        %1207 = vmatpush.msra.mxu0 %v1206
        %v1208 = vand.u32 %v965, 4294901760
        %1209 = vmatpush.msra.mxu0 %v1208
        %v1210 = vand.u32 %v964, 4294901760
        %1211 = vmatpush.msra.mxu0 %v1210
        %v1212 = vand.u32 %v963, 4294901760
        %v1213 = vsub.f32 %v963, %v1212
        %v1214 = vand.u32 %v1213, 4294901760
        %1215 = vmatmul.f32.gmra.mxu0 %v1214
        %v1216 = vpop.f32.mrf.mxu0
        %v1217 = vadd.f32 %v1178, %v1216
        %1218 = vdwg.mxu0
        %v1219 = vand.u32 %v979, 4294901760
        %v1220 = vsub.f32 %v979, %v1219
        %v1221 = vand.u32 %v1220, 4294901760
        %1222 = vmatpush.msra.mxu0 %v1221
        %v1223 = vand.u32 %v978, 4294901760
        %v1224 = vsub.f32 %v978, %v1223
        %v1225 = vand.u32 %v1224, 4294901760
        %1226 = vmatpush.msra.mxu0 %v1225
        %v1227 = vand.u32 %v977, 4294901760
        %v1228 = vsub.f32 %v977, %v1227
        %v1229 = vand.u32 %v1228, 4294901760
        %1230 = vmatpush.msra.mxu0 %v1229
        %v1231 = vand.u32 %v976, 4294901760
        %v1232 = vsub.f32 %v976, %v1231
        %v1233 = vand.u32 %v1232, 4294901760
        %1234 = vmatpush.msra.mxu0 %v1233
        %v1235 = vand.u32 %v975, 4294901760
        %v1236 = vsub.f32 %v975, %v1235
        %v1237 = vand.u32 %v1236, 4294901760
        %1238 = vmatpush.msra.mxu0 %v1237
        %v1239 = vand.u32 %v974, 4294901760
        %v1240 = vsub.f32 %v974, %v1239
        %v1241 = vand.u32 %v1240, 4294901760
        %1242 = vmatpush.msra.mxu0 %v1241
        %v1243 = vand.u32 %v973, 4294901760
        %v1244 = vsub.f32 %v973, %v1243
        %v1245 = vand.u32 %v1244, 4294901760
        %1246 = vmatpush.msra.mxu0 %v1245
        %v1247 = vand.u32 %v972, 4294901760
        %v1248 = vsub.f32 %v972, %v1247
        %v1249 = vand.u32 %v1248, 4294901760
        %1250 = vmatpush.msra.mxu0 %v1249
        %v1251 = vand.u32 %v971, 4294901760
        %v1252 = vsub.f32 %v971, %v1251
        %v1253 = vand.u32 %v1252, 4294901760
        %1254 = vmatpush.msra.mxu0 %v1253
        %v1255 = vand.u32 %v970, 4294901760
        %v1256 = vsub.f32 %v970, %v1255
        %v1257 = vand.u32 %v1256, 4294901760
        %1258 = vmatpush.msra.mxu0 %v1257
        %v1259 = vand.u32 %v969, 4294901760
        %v1260 = vsub.f32 %v969, %v1259
        %v1261 = vand.u32 %v1260, 4294901760
        %1262 = vmatpush.msra.mxu0 %v1261
        %v1263 = vand.u32 %v968, 4294901760
        %v1264 = vsub.f32 %v968, %v1263
        %v1265 = vand.u32 %v1264, 4294901760
        %1266 = vmatpush.msra.mxu0 %v1265
        %v1267 = vand.u32 %v967, 4294901760
        %v1268 = vsub.f32 %v967, %v1267
        %v1269 = vand.u32 %v1268, 4294901760
        %1270 = vmatpush.msra.mxu0 %v1269
        %v1271 = vand.u32 %v966, 4294901760
        %v1272 = vsub.f32 %v966, %v1271
        %v1273 = vand.u32 %v1272, 4294901760
        %1274 = vmatpush.msra.mxu0 %v1273
        %v1275 = vand.u32 %v965, 4294901760
        %v1276 = vsub.f32 %v965, %v1275
        %v1277 = vand.u32 %v1276, 4294901760
        %1278 = vmatpush.msra.mxu0 %v1277
        %v1279 = vand.u32 %v964, 4294901760
        %v1280 = vsub.f32 %v964, %v1279
        %v1281 = vand.u32 %v1280, 4294901760
        %1282 = vmatpush.msra.mxu0 %v1281
        %v1283 = vand.u32 %v963, 4294901760
        %1284 = vmatmul.f32.gmra.mxu0 %v1283
        %v1285 = vpop.f32.mrf.mxu0
        %v1286 = vadd.f32 %v1217, %v1285
        %1287 = vdwg.mxu0
        %v1288 = vand.u32 %v979, 4294901760
        %1289 = vmatpush.msra.mxu0 %v1288
        %v1290 = vand.u32 %v978, 4294901760
        %1291 = vmatpush.msra.mxu0 %v1290
        %v1292 = vand.u32 %v977, 4294901760
        %1293 = vmatpush.msra.mxu0 %v1292
        %v1294 = vand.u32 %v976, 4294901760
        %1295 = vmatpush.msra.mxu0 %v1294
        %v1296 = vand.u32 %v975, 4294901760
        %1297 = vmatpush.msra.mxu0 %v1296
        %v1298 = vand.u32 %v974, 4294901760
        %1299 = vmatpush.msra.mxu0 %v1298
        %v1300 = vand.u32 %v973, 4294901760
        %1301 = vmatpush.msra.mxu0 %v1300
        %v1302 = vand.u32 %v972, 4294901760
        %1303 = vmatpush.msra.mxu0 %v1302
        %v1304 = vand.u32 %v971, 4294901760
        %1305 = vmatpush.msra.mxu0 %v1304
        %v1306 = vand.u32 %v970, 4294901760
        %1307 = vmatpush.msra.mxu0 %v1306
        %v1308 = vand.u32 %v969, 4294901760
        %1309 = vmatpush.msra.mxu0 %v1308
        %v1310 = vand.u32 %v968, 4294901760
        %1311 = vmatpush.msra.mxu0 %v1310
        %v1312 = vand.u32 %v967, 4294901760
        %1313 = vmatpush.msra.mxu0 %v1312
        %v1314 = vand.u32 %v966, 4294901760
        %1315 = vmatpush.msra.mxu0 %v1314
        %v1316 = vand.u32 %v965, 4294901760
        %1317 = vmatpush.msra.mxu0 %v1316
        %v1318 = vand.u32 %v964, 4294901760
        %1319 = vmatpush.msra.mxu0 %v1318
        %v1320 = vand.u32 %v963, 4294901760
        %1321 = vmatmul.f32.gmra.mxu0 %v1320
        %v1322 = vpop.f32.mrf.mxu0
        %v1323 = vadd.f32 %v1286, %v1322
        %1324 = vdwg.mxu0
        %v1325 = vxor.u32 %v1323, 2147483648
        %v1326 = vmul.f32 %v1325, 1.442695
        %v1327 = vpow.pop %v1326
        %v1328 = vadd.f32 %v1327, 1.0
        %v1329 = vrcp.pop %v1328
        %v1330 = vmul.f32 %v1328, %v1329
        %v1331 = vsub.f32 1.0, %v1330
        %v1332 = vmul.f32 %v1329, %v1331
        %v1333 = vadd.f32 %v1329, %v1332
        %vm1334 = vweird.f32 %v1328
        %vm1335 = vweird.f32 %v1329
        %vm1336 = vmor %vm1334, %vm1335
        %v1337 = vsel %vm1336, %v1329, %v1333
        %v1338 = vand.u32 2147483647, %v1328
        %vm1339 = vcmp.eq.f32.partialorder %v1338, 8.507059e+37
        %v1340 = vand.u32 %v1328, 2147483648
        %v1341 = vor.u32 1.1754944e-38, %v1340
        %v1342 = vsel %vm1339, %v1341, %v1337
        %v1343 = vmul.f32 1.0, %v1342
        %v1344 = vperm.slane %v1343, 0
        %v1345 = vlaneseq
        %v1346 = vshrl.u32 %v1345, 7
        %1348 = vset.pattern.permute.xlu0 %v1346
        %1349 = vperm.xlu0 %1348, %v1344
        %v1350 = vpop.permute.xlu0 %1349
        %v1351 = vlaneseq
        %v1352 = vshrl.u32 %v1351, 7
        %v1353 = vadd.s32 %v1352, 8
        %1354 = vset.pattern.permute.xlu0 %v1353
        %1355 = vperm.xlu0 %1354, %v1344
        %v1356 = vpop.permute.xlu0 %1355
        %v1357 = vlaneseq
        %v1358 = vshrl.u32 %v1357, 7
        %v1359 = vadd.s32 %v1358, 16
        %1360 = vset.pattern.permute.xlu0 %v1359
        %1361 = vperm.xlu0 %1360, %v1344
        %v1362 = vpop.permute.xlu0 %1361
        %v1363 = vlaneseq
        %v1364 = vshrl.u32 %v1363, 7
        %v1365 = vadd.s32 %v1364, 24
        %1366 = vset.pattern.permute.xlu0 %v1365
        %1367 = vperm.xlu0 %1366, %v1344
        %v1368 = vpop.permute.xlu0 %1367
        %v1369 = vlaneseq
        %v1370 = vshrl.u32 %v1369, 7
        %v1371 = vadd.s32 %v1370, 32
        %1372 = vset.pattern.permute.xlu0 %v1371
        %1373 = vperm.xlu0 %1372, %v1344
        %v1374 = vpop.permute.xlu0 %1373
        %v1375 = vlaneseq
        %v1376 = vshrl.u32 %v1375, 7
        %v1377 = vadd.s32 %v1376, 40
        %1378 = vset.pattern.permute.xlu0 %v1377
        %1379 = vperm.xlu0 %1378, %v1344
        %v1380 = vpop.permute.xlu0 %1379
        %v1381 = vlaneseq
        %v1382 = vshrl.u32 %v1381, 7
        %v1383 = vadd.s32 %v1382, 48
        %1384 = vset.pattern.permute.xlu0 %v1383
        %1385 = vperm.xlu0 %1384, %v1344
        %v1386 = vpop.permute.xlu0 %1385
        %v1387 = vlaneseq
        %v1388 = vshrl.u32 %v1387, 7
        %v1389 = vadd.s32 %v1388, 56
        %1390 = vset.pattern.permute.xlu0 %v1389
        %1391 = vperm.xlu0 %1390, %v1344
        %v1392 = vpop.permute.xlu0 %1391
        %v1393 = vlaneseq
        %v1394 = vshrl.u32 %v1393, 7
        %v1395 = vadd.s32 %v1394, 64
        %1396 = vset.pattern.permute.xlu0 %v1395
        %1397 = vperm.xlu0 %1396, %v1344
        %v1398 = vpop.permute.xlu0 %1397
        %v1399 = vlaneseq
        %v1400 = vshrl.u32 %v1399, 7
        %v1401 = vadd.s32 %v1400, 72
        %1402 = vset.pattern.permute.xlu0 %v1401
        %1403 = vperm.xlu0 %1402, %v1344
        %v1404 = vpop.permute.xlu0 %1403
        %v1405 = vlaneseq
        %v1406 = vshrl.u32 %v1405, 7
        %v1407 = vadd.s32 %v1406, 80
        %1408 = vset.pattern.permute.xlu0 %v1407
        %1409 = vperm.xlu0 %1408, %v1344
        %v1410 = vpop.permute.xlu0 %1409
        %v1411 = vlaneseq
        %v1412 = vshrl.u32 %v1411, 7
        %v1413 = vadd.s32 %v1412, 88
        %1414 = vset.pattern.permute.xlu0 %v1413
        %1415 = vperm.xlu0 %1414, %v1344
        %v1416 = vpop.permute.xlu0 %1415
        %v1417 = vlaneseq
        %v1418 = vshrl.u32 %v1417, 7
        %v1419 = vadd.s32 %v1418, 96
        %1420 = vset.pattern.permute.xlu0 %v1419
        %1421 = vperm.xlu0 %1420, %v1344
        %v1422 = vpop.permute.xlu0 %1421
        %v1423 = vlaneseq
        %v1424 = vshrl.u32 %v1423, 7
        %v1425 = vadd.s32 %v1424, 104
        %1426 = vset.pattern.permute.xlu0 %v1425
        %1427 = vperm.xlu0 %1426, %v1344
        %v1428 = vpop.permute.xlu0 %1427
        %v1429 = vlaneseq
        %v1430 = vshrl.u32 %v1429, 7
        %v1431 = vadd.s32 %v1430, 112
        %1432 = vset.pattern.permute.xlu0 %v1431
        %1433 = vperm.xlu0 %1432, %v1344
        %v1434 = vpop.permute.xlu0 %1433
        %v1435 = vlaneseq
        %v1436 = vshrl.u32 %v1435, 7
        %v1437 = vadd.s32 %v1436, 120
        %1438 = vset.pattern.permute.xlu0 %v1437
        %1439 = vperm.xlu0 %1438, %v1344
        %v1440 = vpop.permute.xlu0 %1439
        %v1441 = vperm.slane %v1343, 1
        %v1442 = vlaneseq
        %v1443 = vshrl.u32 %v1442, 7
        %1445 = vset.pattern.permute.xlu0 %v1443
        %1446 = vperm.xlu0 %1445, %v1441
        %v1447 = vpop.permute.xlu0 %1446
        %v1448 = vlaneseq
        %v1449 = vshrl.u32 %v1448, 7
        %v1450 = vadd.s32 %v1449, 8
        %1451 = vset.pattern.permute.xlu0 %v1450
        %1452 = vperm.xlu0 %1451, %v1441
        %v1453 = vpop.permute.xlu0 %1452
        %v1454 = vlaneseq
        %v1455 = vshrl.u32 %v1454, 7
        %v1456 = vadd.s32 %v1455, 16
        %1457 = vset.pattern.permute.xlu0 %v1456
        %1458 = vperm.xlu0 %1457, %v1441
        %v1459 = vpop.permute.xlu0 %1458
        %v1460 = vlaneseq
        %v1461 = vshrl.u32 %v1460, 7
        %v1462 = vadd.s32 %v1461, 24
        %1463 = vset.pattern.permute.xlu0 %v1462
        %1464 = vperm.xlu0 %1463, %v1441
        %v1465 = vpop.permute.xlu0 %1464
        %v1466 = vlaneseq
        %v1467 = vshrl.u32 %v1466, 7
        %v1468 = vadd.s32 %v1467, 32
        %1469 = vset.pattern.permute.xlu0 %v1468
        %1470 = vperm.xlu0 %1469, %v1441
        %v1471 = vpop.permute.xlu0 %1470
        %v1472 = vlaneseq
        %v1473 = vshrl.u32 %v1472, 7
        %v1474 = vadd.s32 %v1473, 40
        %1475 = vset.pattern.permute.xlu0 %v1474
        %1476 = vperm.xlu0 %1475, %v1441
        %v1477 = vpop.permute.xlu0 %1476
        %v1478 = vlaneseq
        %v1479 = vshrl.u32 %v1478, 7
        %v1480 = vadd.s32 %v1479, 48
        %1481 = vset.pattern.permute.xlu0 %v1480
        %1482 = vperm.xlu0 %1481, %v1441
        %v1483 = vpop.permute.xlu0 %1482
        %v1484 = vlaneseq
        %v1485 = vshrl.u32 %v1484, 7
        %v1486 = vadd.s32 %v1485, 56
        %1487 = vset.pattern.permute.xlu0 %v1486
        %1488 = vperm.xlu0 %1487, %v1441
        %v1489 = vpop.permute.xlu0 %1488
        %v1490 = vlaneseq
        %v1491 = vshrl.u32 %v1490, 7
        %v1492 = vadd.s32 %v1491, 64
        %1493 = vset.pattern.permute.xlu0 %v1492
        %1494 = vperm.xlu0 %1493, %v1441
        %v1495 = vpop.permute.xlu0 %1494
        %v1496 = vlaneseq
        %v1497 = vshrl.u32 %v1496, 7
        %v1498 = vadd.s32 %v1497, 72
        %1499 = vset.pattern.permute.xlu0 %v1498
        %1500 = vperm.xlu0 %1499, %v1441
        %v1501 = vpop.permute.xlu0 %1500
        %v1502 = vlaneseq
        %v1503 = vshrl.u32 %v1502, 7
        %v1504 = vadd.s32 %v1503, 80
        %1505 = vset.pattern.permute.xlu0 %v1504
        %1506 = vperm.xlu0 %1505, %v1441
        %v1507 = vpop.permute.xlu0 %1506
        %v1508 = vlaneseq
        %v1509 = vshrl.u32 %v1508, 7
        %v1510 = vadd.s32 %v1509, 88
        %1511 = vset.pattern.permute.xlu0 %v1510
        %1512 = vperm.xlu0 %1511, %v1441
        %v1513 = vpop.permute.xlu0 %1512
        %v1514 = vlaneseq
        %v1515 = vshrl.u32 %v1514, 7
        %v1516 = vadd.s32 %v1515, 96
        %1517 = vset.pattern.permute.xlu0 %v1516
        %1518 = vperm.xlu0 %1517, %v1441
        %v1519 = vpop.permute.xlu0 %1518
        %v1520 = vlaneseq
        %v1521 = vshrl.u32 %v1520, 7
        %v1522 = vadd.s32 %v1521, 104
        %1523 = vset.pattern.permute.xlu0 %v1522
        %1524 = vperm.xlu0 %1523, %v1441
        %v1525 = vpop.permute.xlu0 %1524
        %v1526 = vlaneseq
        %v1527 = vshrl.u32 %v1526, 7
        %v1528 = vadd.s32 %v1527, 112
        %1529 = vset.pattern.permute.xlu0 %v1528
        %1530 = vperm.xlu0 %1529, %v1441
        %v1531 = vpop.permute.xlu0 %1530
        %v1532 = vlaneseq
        %v1533 = vshrl.u32 %v1532, 7
        %v1534 = vadd.s32 %v1533, 120
        %1535 = vset.pattern.permute.xlu0 %v1534
        %1536 = vperm.xlu0 %1535, %v1441
        %v1537 = vpop.permute.xlu0 %1536
        %v1538 = vmul.f32 %v281, %v1350
        %v1539 = vmul.f32 %v282, %v1350
        %v1540 = vmul.f32 %v283, %v1356
        %v1541 = vmul.f32 %v284, %v1356
        %v1542 = vmul.f32 %v285, %v1362
        %v1543 = vmul.f32 %v286, %v1362
        %v1544 = vmul.f32 %v287, %v1368
        %v1545 = vmul.f32 %v288, %v1368
        %v1546 = vmul.f32 %v289, %v1374
        %v1547 = vmul.f32 %v290, %v1374
        %v1548 = vmul.f32 %v291, %v1380
        %v1549 = vmul.f32 %v292, %v1380
        %v1550 = vmul.f32 %v293, %v1386
        %v1551 = vmul.f32 %v294, %v1386
        %v1552 = vmul.f32 %v295, %v1392
        %v1553 = vmul.f32 %v296, %v1392
        %v1554 = vmul.f32 %v297, %v1398
        %v1555 = vmul.f32 %v298, %v1398
        %v1556 = vmul.f32 %v299, %v1404
        %v1557 = vmul.f32 %v300, %v1404
        %v1558 = vmul.f32 %v301, %v1410
        %v1559 = vmul.f32 %v302, %v1410
        %v1560 = vmul.f32 %v303, %v1416
        %v1561 = vmul.f32 %v304, %v1416
        %v1562 = vmul.f32 %v305, %v1422
        %v1563 = vmul.f32 %v306, %v1422
        %v1564 = vmul.f32 %v307, %v1428
        %v1565 = vmul.f32 %v308, %v1428
        %v1566 = vmul.f32 %v309, %v1434
        %v1567 = vmul.f32 %v310, %v1434
        %v1568 = vmul.f32 %v311, %v1440
        %v1569 = vmul.f32 %v312, %v1440
        %v1570 = vmul.f32 %v313, %v1447
        %v1571 = vmul.f32 %v314, %v1447
        %v1572 = vmul.f32 %v315, %v1453
        %v1573 = vmul.f32 %v316, %v1453
        %v1574 = vmul.f32 %v317, %v1459
        %v1575 = vmul.f32 %v318, %v1459
        %v1576 = vmul.f32 %v319, %v1465
        %v1577 = vmul.f32 %v320, %v1465
        %v1578 = vmul.f32 %v321, %v1471
        %v1579 = vmul.f32 %v322, %v1471
        %v1580 = vmul.f32 %v323, %v1477
        %v1581 = vmul.f32 %v324, %v1477
        %v1582 = vmul.f32 %v325, %v1483
        %v1583 = vmul.f32 %v326, %v1483
        %v1584 = vmul.f32 %v327, %v1489
        %v1585 = vmul.f32 %v328, %v1489
        %v1586 = vmul.f32 %v329, %v1495
        %v1587 = vmul.f32 %v330, %v1495
        %v1588 = vmul.f32 %v331, %v1501
        %v1589 = vmul.f32 %v332, %v1501
        %v1590 = vmul.f32 %v333, %v1507
        %v1591 = vmul.f32 %v334, %v1507
        %v1592 = vmul.f32 %v335, %v1513
        %v1593 = vmul.f32 %v336, %v1513
        %v1594 = vmul.f32 %v337, %v1519
        %v1595 = vmul.f32 %v338, %v1519
        %v1596 = vmul.f32 %v339, %v1525
        %v1597 = vmul.f32 %v340, %v1525
        %v1598 = vmul.f32 %v341, %v1531
        %v1599 = vmul.f32 %v342, %v1531
        %v1600 = vmul.f32 %v343, %v1537
        %v1601 = vmul.f32 %v344, %v1537
        %1602 = vst [vmem:[%s278] sm:$0xff] %v1538
        %1603 = vst [vmem:[%s278 + $0x8] sm:$0xff] %v1539
        %1604 = vst [vmem:[%s278 + $0x10] sm:$0xff] %v1540
        %1605 = vst [vmem:[%s278 + $0x18] sm:$0xff] %v1541
        %1606 = vst [vmem:[%s278 + $0x20] sm:$0xff] %v1542
        %1607 = vst [vmem:[%s278 + $0x28] sm:$0xff] %v1543
        %1608 = vst [vmem:[%s278 + $0x30] sm:$0xff] %v1544
        %1609 = vst [vmem:[%s278 + $0x38] sm:$0xff] %v1545
        %1610 = vst [vmem:[%s278 + $0x40] sm:$0xff] %v1546
        %1611 = vst [vmem:[%s278 + $0x48] sm:$0xff] %v1547
        %1612 = vst [vmem:[%s278 + $0x50] sm:$0xff] %v1548
        %1613 = vst [vmem:[%s278 + $0x58] sm:$0xff] %v1549
        %1614 = vst [vmem:[%s278 + $0x60] sm:$0xff] %v1550
        %1615 = vst [vmem:[%s278 + $0x68] sm:$0xff] %v1551
        %1616 = vst [vmem:[%s278 + $0x70] sm:$0xff] %v1552
        %1617 = vst [vmem:[%s278 + $0x78] sm:$0xff] %v1553
        %1618 = vst [vmem:[%s278 + $0x80] sm:$0xff] %v1554
        %1619 = vst [vmem:[%s278 + $0x88] sm:$0xff] %v1555
        %1620 = vst [vmem:[%s278 + $0x90] sm:$0xff] %v1556
        %1621 = vst [vmem:[%s278 + $0x98] sm:$0xff] %v1557
        %1622 = vst [vmem:[%s278 + $0xa0] sm:$0xff] %v1558
        %1623 = vst [vmem:[%s278 + $0xa8] sm:$0xff] %v1559
        %1624 = vst [vmem:[%s278 + $0xb0] sm:$0xff] %v1560
        %1625 = vst [vmem:[%s278 + $0xb8] sm:$0xff] %v1561
        %1626 = vst [vmem:[%s278 + $0xc0] sm:$0xff] %v1562
        %1627 = vst [vmem:[%s278 + $0xc8] sm:$0xff] %v1563
        %1628 = vst [vmem:[%s278 + $0xd0] sm:$0xff] %v1564
        %1629 = vst [vmem:[%s278 + $0xd8] sm:$0xff] %v1565
        %1630 = vst [vmem:[%s278 + $0xe0] sm:$0xff] %v1566
        %1631 = vst [vmem:[%s278 + $0xe8] sm:$0xff] %v1567
        %1632 = vst [vmem:[%s278 + $0xf0] sm:$0xff] %v1568
        %1633 = vst [vmem:[%s278 + $0xf8] sm:$0xff] %v1569
        %1634 = vst [vmem:[%s278 + $0x100] sm:$0xff] %v1570
        %1635 = vst [vmem:[%s278 + $0x108] sm:$0xff] %v1571
        %1636 = vst [vmem:[%s278 + $0x110] sm:$0xff] %v1572
        %1637 = vst [vmem:[%s278 + $0x118] sm:$0xff] %v1573
        %1638 = vst [vmem:[%s278 + $0x120] sm:$0xff] %v1574
        %1639 = vst [vmem:[%s278 + $0x128] sm:$0xff] %v1575
        %1640 = vst [vmem:[%s278 + $0x130] sm:$0xff] %v1576
        %1641 = vst [vmem:[%s278 + $0x138] sm:$0xff] %v1577
        %1642 = vst [vmem:[%s278 + $0x140] sm:$0xff] %v1578
        %1643 = vst [vmem:[%s278 + $0x148] sm:$0xff] %v1579
        %1644 = vst [vmem:[%s278 + $0x150] sm:$0xff] %v1580
        %1645 = vst [vmem:[%s278 + $0x158] sm:$0xff] %v1581
        %1646 = vst [vmem:[%s278 + $0x160] sm:$0xff] %v1582
        %1647 = vst [vmem:[%s278 + $0x168] sm:$0xff] %v1583
        %1648 = vst [vmem:[%s278 + $0x170] sm:$0xff] %v1584
        %1649 = vst [vmem:[%s278 + $0x178] sm:$0xff] %v1585
        %1650 = vst [vmem:[%s278 + $0x180] sm:$0xff] %v1586
        %1651 = vst [vmem:[%s278 + $0x188] sm:$0xff] %v1587
        %1652 = vst [vmem:[%s278 + $0x190] sm:$0xff] %v1588
        %1653 = vst [vmem:[%s278 + $0x198] sm:$0xff] %v1589
        %1654 = vst [vmem:[%s278 + $0x1a0] sm:$0xff] %v1590
        %1655 = vst [vmem:[%s278 + $0x1a8] sm:$0xff] %v1591
        %1656 = vst [vmem:[%s278 + $0x1b0] sm:$0xff] %v1592
        %1657 = vst [vmem:[%s278 + $0x1b8] sm:$0xff] %v1593
        %1658 = vst [vmem:[%s278 + $0x1c0] sm:$0xff] %v1594
        %1659 = vst [vmem:[%s278 + $0x1c8] sm:$0xff] %v1595
        %1660 = vst [vmem:[%s278 + $0x1d0] sm:$0xff] %v1596
        %1661 = vst [vmem:[%s278 + $0x1d8] sm:$0xff] %v1597
        %1662 = vst [vmem:[%s278 + $0x1e0] sm:$0xff] %v1598
        %1663 = vst [vmem:[%s278 + $0x1e8] sm:$0xff] %v1599
        %1664 = vst [vmem:[%s278 + $0x1f0] sm:$0xff] %v1600
        %1665 = vst [vmem:[%s278 + $0x1f8] sm:$0xff] %v1601
        %s1666 = sand.u32 %s141, 1
        %s1667 = scalar_lea.sflag [#allocation4], %s1666
        %s1668 = sand.u32 %s141, 1
        %s1669 = smul.addr %s1668, 512
        %s1670 = scalar_lea.vmem [#allocation8], %s1669
        // Predicated region
        $region53: #{tpu_custom_call.1} parent=39 // pred_check
          %p1671 = pneg %p151
        $region54: #{tpu_custom_call.1} parent=39 // pred_check_branch
          %1673 = sbr.rel (%p1671) target = $region56
        $region55: #{tpu_custom_call.1} parent=39 // pred_region
          %s1674 = smul.u32 2, %s23
          %1676 = vsyncadd %s1667, 0
          %s1677 = smul.addr %s1674, 32
          %s1678 = smul.addr %s1677, 8
          %s1679 = scalar_lea.hbm %s5, %s1678
          %s1680 = sshll.u32 %s1670, 4
          %s1681 = int_to_ptr.vmem [resolvable:$true] %s1680
          %s1682 = sshll.u32 %s1679, 4
          %s1683 = int_to_ptr.hbm [resolvable:$true] %s1682
          %1688 = dma.vmem_to_hbm [thread:$0]  %s1681, 8192, %s1683, %s1667, 256, 256, 16
        $region56: #{tpu_custom_call.1} parent=39 // pred_fallthru
          _
      $region40: #{tpu_custom_call.1} parent=5 // pred_fallthru
        _
      %p1689 = scmp.le.s32.totalorder 2, %s18
      // Predicated region
      $region57: #{tpu_custom_call.1} parent=5 // pred_check
        %p1690 = pneg %p1689
      $region58: #{tpu_custom_call.1} parent=5 // pred_check_branch
        %1692 = sbr.rel (%p1690) target = $region60
      $region59: #{tpu_custom_call.1} parent=5 // pred_region
        %s1693 = ssub.s32 %s18, 2
        // Predicated region
        $region61: #{tpu_custom_call.1} parent=59 // pred_check
          %p1694 = pneg %p157
        $region62: #{tpu_custom_call.1} parent=59 // pred_check_branch
          %1696 = sbr.rel (%p1694) target = $region64
        $region63: #{tpu_custom_call.1} parent=59 // pred_region
          %s1697 = sand.u32 %s142, 1
          %s1698 = scalar_lea.sflag [#allocation4], %s1697
          %s1699 = sand.u32 %s142, 1
          %s1700 = smul.addr %s1699, 512
          %s1701 = scalar_lea.vmem [#allocation8], %s1700
          %1703 = dma.done %s1698, 8192
        $region64: #{tpu_custom_call.1} parent=59 // pred_fallthru
          _
      $region60: #{tpu_custom_call.1} parent=5 // pred_fallthru
        _
    $region6: #{tpu_custom_call.1} parent=1 // loop_footer
      %s22 = sadd.s32 1, %s18
    $region7: #{tpu_custom_call.1} parent=1 // loop_footer_branch
      %17 = sbr.rel target = $region3
    $region8: #{tpu_custom_call.1} parent=1 // loop_exit
      _
    %1704 = vsyncpa [#allocation3], 1
    %s1705 = scalar_lea.sflag [#allocation3], 1
    %1706 = vsyncpa %s1705, 1
    %1707 = vsyncpa [#allocation6], 1
    %1708 = vsyncpa [#allocation4], 1
    %s1709 = scalar_lea.sflag [#allocation4], 1
    %1710 = vsyncpa %s1709, 1

</llo_original>
